<compile_context>
chip_gen: v5e
topology: v5e:2x2
jax: 0.10.0
libtpu: 0.0.40
codegen_flags: <defaults>
</compile_context>

<pallas_src>
import functools
import math

import jax
import jax.numpy as jnp
from jax import lax
from jax.experimental import pallas as pl
from jax.experimental.pallas import tpu as pltpu


# Order of the stacked per-layer weight arrays passed to the kernel.
WNAMES = ("wqkv", "bqkv", "wo", "bo", "g1", "be1",
          "w1", "bf1", "w2", "bf2", "g2", "be2")


def _layer_norm(x, g, b, eps=1e-5):
    mu = jnp.mean(x, axis=-1, keepdims=True)
    var = jnp.mean(jnp.square(x - mu), axis=-1, keepdims=True)
    return (x - mu) * lax.rsqrt(var + eps) * g + b


# ----------------------------------------------------------------------------
# Fused encoder-stack kernel: one grid step = (one batch tile, one layer)
# ----------------------------------------------------------------------------
def _encoder_stack_kernel(x_ref, bias_ref,
                          wqkv_ref, bqkv_ref, wo_ref, bo_ref,
                          g1_ref, be1_ref, w1_ref, bf1_ref,
                          w2_ref, bf2_ref, g2_ref, be2_ref,
                          o_ref, *, n_head, bt, seq):
    layer = pl.program_id(1)

    # First layer of this batch tile: seed the resident activation slab.
    # The output block index does not depend on the layer axis, so o_ref is
    # kept resident in VMEM across layers and DMA'd to HBM only once.
    @pl.when(layer == 0)
    def _():
        o_ref[...] = x_ref[...]

    x = o_ref[...]                                # (M, D) f32, M = bt*seq
    M, D = x.shape
    dh = D // n_head

    xb = x.astype(jnp.bfloat16)

    # --- fused Q/K/V projection: one (M, D) x (D, 3D) MXU matmul ------------
    # (the 1/sqrt(dh) attention scale is pre-folded into the Q weights/bias)
    qkv = jnp.dot(xb, wqkv_ref[0], preferred_element_type=jnp.float32)
    qkv = (qkv + bqkv_ref[0]).astype(jnp.bfloat16)          # (M, 3D)
    q3 = qkv[:, :D].reshape(bt, seq, D)                     # 128-lane aligned
    k3 = qkv[:, D:2 * D].reshape(bt, seq, D)
    v3 = qkv[:, 2 * D:].reshape(bt, seq, D)

    # Additive key mask (0 = keep, -1e9 = pad), hoisted out of the head loop.
    bias_full = jnp.broadcast_to(bias_ref[...], (bt, seq, seq))   # f32

    # --- multi-head self-attention, batched over the batch tile -------------
    ctx_parts = []
    for h in range(n_head):                       # static loop, H small
        qh = q3[:, :, h * dh:(h + 1) * dh]        # (bt, S, dh) bf16
        kh = k3[:, :, h * dh:(h + 1) * dh]
        vh = v3[:, :, h * dh:(h + 1) * dh]
        s = jnp.einsum('bqd,bkd->bqk', qh, kh,
                       preferred_element_type=jnp.float32)        # (bt,S,S)
        s = s + bias_full
        m = jnp.max(s, axis=-1, keepdims=True)
        p = jnp.exp(s - m)
        denom = jnp.sum(p, axis=-1, keepdims=True)
        p = p * pl.reciprocal(denom, approx=True)                  # EUP slot
        ctx_parts.append(
            jnp.einsum('bqk,bkd->bqd', p.astype(jnp.bfloat16), vh,
                       preferred_element_type=jnp.float32))        # (bt,S,dh)
    ctx = jnp.concatenate(ctx_parts, axis=-1).reshape(M, D)        # (M, D)

    attn_out = jnp.dot(ctx.astype(jnp.bfloat16), wo_ref[0],
                       preferred_element_type=jnp.float32) + bo_ref[0]
    # TODO(synk): dropout layers are identity here (inference mode).
    x1 = _layer_norm(x + attn_out, g1_ref[0], be1_ref[0])

    # --- position-wise feed-forward ------------------------------------------
    h1 = jnp.dot(x1.astype(jnp.bfloat16), w1_ref[0],
                 preferred_element_type=jnp.float32) + bf1_ref[0]
    h1 = jnp.maximum(h1, 0.0)
    h2 = jnp.dot(h1.astype(jnp.bfloat16), w2_ref[0],
                 preferred_element_type=jnp.float32) + bf2_ref[0]
    x2 = _layer_norm(x1 + h2, g2_ref[0], be2_ref[0])

    # Write the resident output slab; HBM writeback happens only when the
    # batch-tile block changes (i.e. after the last layer).
    o_ref[...] = x2


# ----------------------------------------------------------------------------
# Parameter setup (deterministic, in-script). Per-layer weights are stacked
# along a leading L axis; matmul weights are stored bf16, norm/bias in f32.
# ----------------------------------------------------------------------------
def sinusoid_table(n_position, d_model):
    pos = jnp.arange(n_position, dtype=jnp.float32)[:, None]
    i = jnp.arange(d_model)[None, :]
    angle = pos / jnp.power(10000.0, (2.0 * (i // 2)) / d_model)
    return jnp.where(i % 2 == 0, jnp.sin(angle), jnp.cos(angle)).astype(jnp.float32)


def init_params(key, enc_voc_size, d_model, ffn_hidden, n_layers, n_head,
                pad_idx, n_position=512):
    D, F, L = d_model, ffn_hidden, n_layers
    dh = D // n_head
    inv_sqrt_dh = 1.0 / math.sqrt(dh)
    ks = jax.random.split(key, 12)

    emb = jax.random.normal(ks[0], (enc_voc_size, D), jnp.float32) * 0.02
    emb = emb.at[pad_idx].set(0.0)                # padding_idx row is zero

    def lin(k, *shape):
        din = shape[-2]
        return jax.random.normal(k, shape, jnp.float32) / math.sqrt(din)

    def small(k, *shape):
        return jax.random.normal(k, shape, jnp.float32) * 0.02

    # Fold the 1/sqrt(dh) attention scale into the Q projection weights/bias
    # (mathematically identical to scaling q after the projection).
    wq = lin(ks[1], L, D, D) * inv_sqrt_dh
    wk = lin(ks[2], L, D, D)
    wv = lin(ks[3], L, D, D)
    bqkv = small(ks[4], L, 1, 3 * D)
    bqkv = bqkv.at[..., :D].multiply(inv_sqrt_dh)

    return dict(
        emb=emb,
        pos=sinusoid_table(n_position, D),
        wqkv=jnp.concatenate([wq, wk, wv], axis=-1).astype(jnp.bfloat16),
        bqkv=bqkv,
        wo=lin(ks[5], L, D, D).astype(jnp.bfloat16),
        bo=small(ks[6], L, 1, D),
        g1=jnp.ones((L, 1, D), jnp.float32),
        be1=jnp.zeros((L, 1, D), jnp.float32),
        w1=lin(ks[7], L, D, F).astype(jnp.bfloat16),
        bf1=small(ks[8], L, 1, F),
        w2=lin(ks[9], L, F, D).astype(jnp.bfloat16),
        bf2=small(ks[10], L, 1, D),
        g2=jnp.ones((L, 1, D), jnp.float32),
        be2=jnp.zeros((L, 1, D), jnp.float32),
    )


# ----------------------------------------------------------------------------
# Full Encoder forward
# ----------------------------------------------------------------------------
def encoder_forward(src, src_mask, params, *, n_head, d_model, batch_tile=None):
    B, S = src.shape
    D = d_model
    L = params["wqkv"].shape[0]
    if batch_tile is None:
        batch_tile = B                 # on v7x pick batch_tile so B//batch_tile >= 2
    assert B % batch_tile == 0
    assert S % 8 == 0, "seq must be sublane-aligned (multiple of 8)"
    assert S <= params["pos"].shape[0], "sequence longer than positional table"
    assert D % n_head == 0

    # Embedding gather + *sqrt(d_model) + positional add: data-dependent gather,
    # left to XLA which fuses the elementwise ops with it (no extra HBM pass).
    x0 = jnp.take(params["emb"], src, axis=0) * math.sqrt(D) + params["pos"][:S][None]
    x0 = x0.astype(jnp.float32).reshape(B * S, D)

    # Additive attention bias from the key mask (1 = keep, 0 = pad).
    bias = ((src_mask.astype(jnp.float32) - 1.0) * 1e9)          # (B, 1, S)

    Mt = batch_tile * S
    num_bt = B // batch_tile
    grid = (num_bt, L)                 # batch tiles parallel, layers sequential

    def w_spec(a):
        shp = a.shape
        return pl.BlockSpec((1,) + shp[1:],
                            lambda b, l, _n=len(shp) - 1: (l,) + (0,) * _n)

    in_specs = ([pl.BlockSpec((Mt, D), lambda b, l: (b, 0)),
                 pl.BlockSpec((batch_tile, 1, S), lambda b, l: (b, 0, 0))]
                + [w_spec(params[name]) for name in WNAMES])

    out = pl.pallas_call(
        functools.partial(_encoder_stack_kernel,
                          n_head=n_head, bt=batch_tile, seq=S),
        out_shape=jax.ShapeDtypeStruct((B * S, D), jnp.float32),
        grid=grid,
        in_specs=in_specs,
        out_specs=pl.BlockSpec((Mt, D), lambda b, l: (b, 0)),
        compiler_params=pltpu.CompilerParams(
            dimension_semantics=("parallel", "arbitrary"),
            vmem_limit_bytes=32 * 1024 * 1024,   # fits v5e/v6e/v7x scoped budgets
        ),
    )(x0, bias, *[params[name] for name in WNAMES])

    return out.reshape(B, S, D)


if __name__ == "__main__":
    B, S = 2, 8
    VOCAB, D_MODEL, N_HEAD, FFN, N_LAYERS = 32, 128, 4, 256, 2
    PAD_IDX = 0

    key = jax.random.PRNGKey(0)
    k_tok, k_par = jax.random.split(key)

    src = jax.random.randint(k_tok, (B, S), 1, VOCAB).astype(jnp.int32)
    src = src.at[0, S - 2:].set(PAD_IDX)                          # padding tokens
    src_mask = (src != PAD_IDX).astype(jnp.float32)[:, None, :]   # (B, 1, S)

    params = init_params(k_par, VOCAB, D_MODEL, FFN, N_LAYERS, N_HEAD, PAD_IDX)

    out = encoder_forward(src, src_mask, params, n_head=N_HEAD, d_model=D_MODEL)
    jax.block_until_ready(out)
    assert out.shape == (B, S, D_MODEL) and out.dtype == jnp.float32
    assert bool(jnp.all(jnp.isfinite(out)))
    print("KERNEL_OK")
</pallas_src>

<mosaic_0001>
module attributes {stable_mosaic.version = 11 : i64} {
  func.func @_encoder_stack_kernel(%arg0: i32, %arg1: i32, %arg2: memref<16x128xf32, #tpu.memory_space<vmem>>, %arg3: memref<2x1x8xf32, #tpu.memory_space<vmem>>, %arg4: memref<1x128x384xbf16, #tpu.memory_space<vmem>>, %arg5: memref<1x1x384xf32, #tpu.memory_space<vmem>>, %arg6: memref<1x128x128xbf16, #tpu.memory_space<vmem>>, %arg7: memref<1x1x128xf32, #tpu.memory_space<vmem>>, %arg8: memref<1x1x128xf32, #tpu.memory_space<vmem>>, %arg9: memref<1x1x128xf32, #tpu.memory_space<vmem>>, %arg10: memref<1x128x256xbf16, #tpu.memory_space<vmem>>, %arg11: memref<1x1x256xf32, #tpu.memory_space<vmem>>, %arg12: memref<1x256x128xbf16, #tpu.memory_space<vmem>>, %arg13: memref<1x1x128xf32, #tpu.memory_space<vmem>>, %arg14: memref<1x1x128xf32, #tpu.memory_space<vmem>>, %arg15: memref<1x1x128xf32, #tpu.memory_space<vmem>>, %arg16: memref<16x128xf32, #tpu.memory_space<vmem>>) attributes {dimension_semantics = [#tpu.dimension_semantics<parallel>, #tpu.dimension_semantics<arbitrary>], iteration_bounds = array<i64: 1, 2>, scalar_prefetch = 0 : i64, scratch_operands = 0 : i64, tpu.core_type = #tpu.core_type<tc>, window_params = [{transform_indices = @transform_0, window_bounds = array<i64: 16, 128>}, {transform_indices = @transform_1, window_bounds = array<i64: 2, 1, 8>}, {transform_indices = @transform_2, window_bounds = array<i64: 1, 128, 384>}, {transform_indices = @transform_3, window_bounds = array<i64: 1, 1, 384>}, {transform_indices = @transform_4, window_bounds = array<i64: 1, 128, 128>}, {transform_indices = @transform_5, window_bounds = array<i64: 1, 1, 128>}, {transform_indices = @transform_6, window_bounds = array<i64: 1, 1, 128>}, {transform_indices = @transform_7, window_bounds = array<i64: 1, 1, 128>}, {transform_indices = @transform_8, window_bounds = array<i64: 1, 128, 256>}, {transform_indices = @transform_9, window_bounds = array<i64: 1, 1, 256>}, {transform_indices = @transform_10, window_bounds = array<i64: 1, 256, 128>}, {transform_indices = @transform_11, window_bounds = array<i64: 1, 1, 128>}, {transform_indices = @transform_12, window_bounds = array<i64: 1, 1, 128>}, {transform_indices = @transform_13, window_bounds = array<i64: 1, 1, 128>}, {transform_indices = @transform_14, window_bounds = array<i64: 16, 128>}]} {
    %c0_i32 = arith.constant 0 : i32
    %0 = arith.cmpi eq, %arg1, %c0_i32 : i32
    %1 = arith.extui %0 : i1 to i32
    %c0_i32_0 = arith.constant 0 : i32
    %2 = arith.cmpi ne, %1, %c0_i32_0 : i32
    scf.if %2 {
      %c0_73 = arith.constant 0 : index
      %c0_74 = arith.constant 0 : index
      %173 = vector.load %arg2[%c0_73, %c0_74] : memref<16x128xf32, #tpu.memory_space<vmem>>, vector<16x128xf32>
      %c0_75 = arith.constant 0 : index
      %c0_76 = arith.constant 0 : index
      %174 = vector.load %arg16[%c0_75, %c0_76] : memref<16x128xf32, #tpu.memory_space<vmem>>, vector<16x128xf32>
      tpu.vector_store %arg16[%c0_75, %c0_76], %173 {strides = array<i32>} : memref<16x128xf32, #tpu.memory_space<vmem>>, vector<16x128xf32>,
    } else {
    }
    %c0 = arith.constant 0 : index
    %c0_1 = arith.constant 0 : index
    %3 = vector.load %arg16[%c0, %c0_1] : memref<16x128xf32, #tpu.memory_space<vmem>>, vector<16x128xf32>
    %4 = arith.truncf %3 : vector<16x128xf32> to vector<16x128xbf16>
    %c0_2 = arith.constant 0 : index
    %c0_3 = arith.constant 0 : index
    %c0_4 = arith.constant 0 : index
    %5 = vector.load %arg4[%c0_2, %c0_3, %c0_4] : memref<1x128x384xbf16, #tpu.memory_space<vmem>>, vector<1x128x384xbf16>
    %6 = vector.shape_cast %5 : vector<1x128x384xbf16> to vector<128x384xbf16>
    %cst = arith.constant dense<0.000000e+00> : vector<16x384xf32>
    %7 = tpu.matmul %4, %6, %cst {dimension_numbers = #tpu.dot_dimension_numbers<[1], [0], [0], [1], [0, 0, 1, 1], [], []>} : vector<16x128xbf16>, vector<128x384xbf16>, vector<16x384xf32> -> vector<16x384xf32>
    %c0_5 = arith.constant 0 : index
    %c0_6 = arith.constant 0 : index
    %c0_7 = arith.constant 0 : index
    %8 = vector.load %arg5[%c0_5, %c0_6, %c0_7] : memref<1x1x384xf32, #tpu.memory_space<vmem>>, vector<1x1x384xf32>
    %9 = vector.shape_cast %8 : vector<1x1x384xf32> to vector<1x384xf32>
    %10 = vector.broadcast %9 : vector<1x384xf32> to vector<16x384xf32>
    %11 = arith.addf %7, %10 : vector<16x384xf32>
    %12 = arith.truncf %11 : vector<16x384xf32> to vector<16x384xbf16>
    %13 = vector.extract_strided_slice %12 {offsets = [0, 0], sizes = [16, 128], strides = [1, 1]} : vector<16x384xbf16> to vector<16x128xbf16>
    %14 = vector.shape_cast %13 : vector<16x128xbf16> to vector<2x8x128xbf16>
    %15 = vector.extract_strided_slice %12 {offsets = [0, 128], sizes = [16, 128], strides = [1, 1]} : vector<16x384xbf16> to vector<16x128xbf16>
    %16 = vector.shape_cast %15 : vector<16x128xbf16> to vector<2x8x128xbf16>
    %17 = vector.extract_strided_slice %12 {offsets = [0, 256], sizes = [16, 128], strides = [1, 1]} : vector<16x384xbf16> to vector<16x128xbf16>
    %18 = vector.shape_cast %17 : vector<16x128xbf16> to vector<2x8x128xbf16>
    %c0_8 = arith.constant 0 : index
    %c0_9 = arith.constant 0 : index
    %c0_10 = arith.constant 0 : index
    %19 = vector.load %arg3[%c0_8, %c0_9, %c0_10] : memref<2x1x8xf32, #tpu.memory_space<vmem>>, vector<2x1x8xf32>
    %20 = vector.shape_cast %19 : vector<2x1x8xf32> to vector<2x1x8xf32>
    %21 = vector.broadcast %20 : vector<2x1x8xf32> to vector<2x8x8xf32>
    %22 = vector.extract_strided_slice %14 {offsets = [0, 0, 0], sizes = [2, 8, 32], strides = [1, 1, 1]} : vector<2x8x128xbf16> to vector<2x8x32xbf16>
    %23 = vector.extract_strided_slice %16 {offsets = [0, 0, 0], sizes = [2, 8, 32], strides = [1, 1, 1]} : vector<2x8x128xbf16> to vector<2x8x32xbf16>
    %24 = vector.extract_strided_slice %18 {offsets = [0, 0, 0], sizes = [2, 8, 32], strides = [1, 1, 1]} : vector<2x8x128xbf16> to vector<2x8x32xbf16>
    "tpu.trace_start"() <{level = 10 : i32, message = "bqd,bkd->bqk"}> : () -> ()
    %cst_11 = arith.constant dense<0.000000e+00> : vector<2x8x8xf32>
    %25 = tpu.matmul %22, %23, %cst_11 {dimension_numbers = #tpu.dot_dimension_numbers<[2], [2], [1], [1], [0, 0, 0, 1, 1, 1], [0], [0]>} : vector<2x8x32xbf16>, vector<2x8x32xbf16>, vector<2x8x8xf32> -> vector<2x8x8xf32>
    "tpu.trace_stop"() : () -> ()
    %26 = arith.addf %25, %21 : vector<2x8x8xf32>
    %cst_12 = arith.constant dense<0xFF800000> : vector<2x8xf32>
    %27 = vector.multi_reduction <maximumf>, %26, %cst_12 [2] : vector<2x8x8xf32> to vector<2x8xf32>
    %28 = vector.shape_cast %27 : vector<2x8xf32> to vector<2x8x1xf32>
    %29 = vector.broadcast %28 : vector<2x8x1xf32> to vector<2x8x8xf32>
    %30 = arith.subf %26, %29 : vector<2x8x8xf32>
    %31 = math.exp %30 : vector<2x8x8xf32>
    %cst_13 = arith.constant dense<0.000000e+00> : vector<2x8xf32>
    %32 = vector.multi_reduction <add>, %31, %cst_13 [2] : vector<2x8x8xf32> to vector<2x8xf32>
    %33 = vector.shape_cast %32 : vector<2x8xf32> to vector<2x8x1xf32>
    %34 = tpu.reciprocal %33 {approx = true} : vector<2x8x1xf32> -> vector<2x8x1xf32>
    %35 = vector.broadcast %34 : vector<2x8x1xf32> to vector<2x8x8xf32>
    %36 = arith.mulf %31, %35 : vector<2x8x8xf32>
    %37 = arith.truncf %36 : vector<2x8x8xf32> to vector<2x8x8xbf16>
    "tpu.trace_start"() <{level = 10 : i32, message = "bqk,bkd->bqd"}> : () -> ()
    %cst_14 = arith.constant dense<0.000000e+00> : vector<2x8x32xf32>
    %38 = tpu.matmul %37, %24, %cst_14 {dimension_numbers = #tpu.dot_dimension_numbers<[2], [1], [1], [2], [0, 0, 0, 1, 1, 2], [0], [0]>} : vector<2x8x8xbf16>, vector<2x8x32xbf16>, vector<2x8x32xf32> -> vector<2x8x32xf32>
    "tpu.trace_stop"() : () -> ()
    %39 = vector.extract_strided_slice %14 {offsets = [0, 0, 32], sizes = [2, 8, 32], strides = [1, 1, 1]} : vector<2x8x128xbf16> to vector<2x8x32xbf16>
    %40 = vector.extract_strided_slice %16 {offsets = [0, 0, 32], sizes = [2, 8, 32], strides = [1, 1, 1]} : vector<2x8x128xbf16> to vector<2x8x32xbf16>
    %41 = vector.extract_strided_slice %18 {offsets = [0, 0, 32], sizes = [2, 8, 32], strides = [1, 1, 1]} : vector<2x8x128xbf16> to vector<2x8x32xbf16>
    "tpu.trace_start"() <{level = 10 : i32, message = "bqd,bkd->bqk"}> : () -> ()
    %cst_15 = arith.constant dense<0.000000e+00> : vector<2x8x8xf32>
    %42 = tpu.matmul %39, %40, %cst_15 {dimension_numbers = #tpu.dot_dimension_numbers<[2], [2], [1], [1], [0, 0, 0, 1, 1, 1], [0], [0]>} : vector<2x8x32xbf16>, vector<2x8x32xbf16>, vector<2x8x8xf32> -> vector<2x8x8xf32>
    "tpu.trace_stop"() : () -> ()
    %43 = arith.addf %42, %21 : vector<2x8x8xf32>
    %cst_16 = arith.constant dense<0xFF800000> : vector<2x8xf32>
    %44 = vector.multi_reduction <maximumf>, %43, %cst_16 [2] : vector<2x8x8xf32> to vector<2x8xf32>
    %45 = vector.shape_cast %44 : vector<2x8xf32> to vector<2x8x1xf32>
    %46 = vector.broadcast %45 : vector<2x8x1xf32> to vector<2x8x8xf32>
    %47 = arith.subf %43, %46 : vector<2x8x8xf32>
    %48 = math.exp %47 : vector<2x8x8xf32>
    %cst_17 = arith.constant dense<0.000000e+00> : vector<2x8xf32>
    %49 = vector.multi_reduction <add>, %48, %cst_17 [2] : vector<2x8x8xf32> to vector<2x8xf32>
    %50 = vector.shape_cast %49 : vector<2x8xf32> to vector<2x8x1xf32>
    %51 = tpu.reciprocal %50 {approx = true} : vector<2x8x1xf32> -> vector<2x8x1xf32>
    %52 = vector.broadcast %51 : vector<2x8x1xf32> to vector<2x8x8xf32>
    %53 = arith.mulf %48, %52 : vector<2x8x8xf32>
    %54 = arith.truncf %53 : vector<2x8x8xf32> to vector<2x8x8xbf16>
    "tpu.trace_start"() <{level = 10 : i32, message = "bqk,bkd->bqd"}> : () -> ()
    %cst_18 = arith.constant dense<0.000000e+00> : vector<2x8x32xf32>
    %55 = tpu.matmul %54, %41, %cst_18 {dimension_numbers = #tpu.dot_dimension_numbers<[2], [1], [1], [2], [0, 0, 0, 1, 1, 2], [0], [0]>} : vector<2x8x8xbf16>, vector<2x8x32xbf16>, vector<2x8x32xf32> -> vector<2x8x32xf32>
    "tpu.trace_stop"() : () -> ()
    %56 = vector.extract_strided_slice %14 {offsets = [0, 0, 64], sizes = [2, 8, 32], strides = [1, 1, 1]} : vector<2x8x128xbf16> to vector<2x8x32xbf16>
    %57 = vector.extract_strided_slice %16 {offsets = [0, 0, 64], sizes = [2, 8, 32], strides = [1, 1, 1]} : vector<2x8x128xbf16> to vector<2x8x32xbf16>
    %58 = vector.extract_strided_slice %18 {offsets = [0, 0, 64], sizes = [2, 8, 32], strides = [1, 1, 1]} : vector<2x8x128xbf16> to vector<2x8x32xbf16>
    "tpu.trace_start"() <{level = 10 : i32, message = "bqd,bkd->bqk"}> : () -> ()
    %cst_19 = arith.constant dense<0.000000e+00> : vector<2x8x8xf32>
    %59 = tpu.matmul %56, %57, %cst_19 {dimension_numbers = #tpu.dot_dimension_numbers<[2], [2], [1], [1], [0, 0, 0, 1, 1, 1], [0], [0]>} : vector<2x8x32xbf16>, vector<2x8x32xbf16>, vector<2x8x8xf32> -> vector<2x8x8xf32>
    "tpu.trace_stop"() : () -> ()
    %60 = arith.addf %59, %21 : vector<2x8x8xf32>
    %cst_20 = arith.constant dense<0xFF800000> : vector<2x8xf32>
    %61 = vector.multi_reduction <maximumf>, %60, %cst_20 [2] : vector<2x8x8xf32> to vector<2x8xf32>
    %62 = vector.shape_cast %61 : vector<2x8xf32> to vector<2x8x1xf32>
    %63 = vector.broadcast %62 : vector<2x8x1xf32> to vector<2x8x8xf32>
    %64 = arith.subf %60, %63 : vector<2x8x8xf32>
    %65 = math.exp %64 : vector<2x8x8xf32>
    %cst_21 = arith.constant dense<0.000000e+00> : vector<2x8xf32>
    %66 = vector.multi_reduction <add>, %65, %cst_21 [2] : vector<2x8x8xf32> to vector<2x8xf32>
    %67 = vector.shape_cast %66 : vector<2x8xf32> to vector<2x8x1xf32>
    %68 = tpu.reciprocal %67 {approx = true} : vector<2x8x1xf32> -> vector<2x8x1xf32>
    %69 = vector.broadcast %68 : vector<2x8x1xf32> to vector<2x8x8xf32>
    %70 = arith.mulf %65, %69 : vector<2x8x8xf32>
    %71 = arith.truncf %70 : vector<2x8x8xf32> to vector<2x8x8xbf16>
    "tpu.trace_start"() <{level = 10 : i32, message = "bqk,bkd->bqd"}> : () -> ()
    %cst_22 = arith.constant dense<0.000000e+00> : vector<2x8x32xf32>
    %72 = tpu.matmul %71, %58, %cst_22 {dimension_numbers = #tpu.dot_dimension_numbers<[2], [1], [1], [2], [0, 0, 0, 1, 1, 2], [0], [0]>} : vector<2x8x8xbf16>, vector<2x8x32xbf16>, vector<2x8x32xf32> -> vector<2x8x32xf32>
    "tpu.trace_stop"() : () -> ()
    %73 = vector.extract_strided_slice %14 {offsets = [0, 0, 96], sizes = [2, 8, 32], strides = [1, 1, 1]} : vector<2x8x128xbf16> to vector<2x8x32xbf16>
    %74 = vector.extract_strided_slice %16 {offsets = [0, 0, 96], sizes = [2, 8, 32], strides = [1, 1, 1]} : vector<2x8x128xbf16> to vector<2x8x32xbf16>
    %75 = vector.extract_strided_slice %18 {offsets = [0, 0, 96], sizes = [2, 8, 32], strides = [1, 1, 1]} : vector<2x8x128xbf16> to vector<2x8x32xbf16>
    "tpu.trace_start"() <{level = 10 : i32, message = "bqd,bkd->bqk"}> : () -> ()
    %cst_23 = arith.constant dense<0.000000e+00> : vector<2x8x8xf32>
    %76 = tpu.matmul %73, %74, %cst_23 {dimension_numbers = #tpu.dot_dimension_numbers<[2], [2], [1], [1], [0, 0, 0, 1, 1, 1], [0], [0]>} : vector<2x8x32xbf16>, vector<2x8x32xbf16>, vector<2x8x8xf32> -> vector<2x8x8xf32>
    "tpu.trace_stop"() : () -> ()
    %77 = arith.addf %76, %21 : vector<2x8x8xf32>
    %cst_24 = arith.constant dense<0xFF800000> : vector<2x8xf32>
    %78 = vector.multi_reduction <maximumf>, %77, %cst_24 [2] : vector<2x8x8xf32> to vector<2x8xf32>
    %79 = vector.shape_cast %78 : vector<2x8xf32> to vector<2x8x1xf32>
    %80 = vector.broadcast %79 : vector<2x8x1xf32> to vector<2x8x8xf32>
    %81 = arith.subf %77, %80 : vector<2x8x8xf32>
    %82 = math.exp %81 : vector<2x8x8xf32>
    %cst_25 = arith.constant dense<0.000000e+00> : vector<2x8xf32>
    %83 = vector.multi_reduction <add>, %82, %cst_25 [2] : vector<2x8x8xf32> to vector<2x8xf32>
    %84 = vector.shape_cast %83 : vector<2x8xf32> to vector<2x8x1xf32>
    %85 = tpu.reciprocal %84 {approx = true} : vector<2x8x1xf32> -> vector<2x8x1xf32>
    %86 = vector.broadcast %85 : vector<2x8x1xf32> to vector<2x8x8xf32>
    %87 = arith.mulf %82, %86 : vector<2x8x8xf32>
    %88 = arith.truncf %87 : vector<2x8x8xf32> to vector<2x8x8xbf16>
    "tpu.trace_start"() <{level = 10 : i32, message = "bqk,bkd->bqd"}> : () -> ()
    %cst_26 = arith.constant dense<0.000000e+00> : vector<2x8x32xf32>
    %89 = tpu.matmul %88, %75, %cst_26 {dimension_numbers = #tpu.dot_dimension_numbers<[2], [1], [1], [2], [0, 0, 0, 1, 1, 2], [0], [0]>} : vector<2x8x8xbf16>, vector<2x8x32xbf16>, vector<2x8x32xf32> -> vector<2x8x32xf32>
    "tpu.trace_stop"() : () -> ()
    %90 = tpu.concatenate %38, %55, %72, %89 in 2 : vector<2x8x32xf32>, vector<2x8x32xf32>, vector<2x8x32xf32>, vector<2x8x32xf32> -> vector<2x8x128xf32>
    %91 = vector.shape_cast %90 : vector<2x8x128xf32> to vector<16x128xf32>
    %92 = arith.truncf %91 : vector<16x128xf32> to vector<16x128xbf16>
    %c0_27 = arith.constant 0 : index
    %c0_28 = arith.constant 0 : index
    %c0_29 = arith.constant 0 : index
    %93 = vector.load %arg6[%c0_27, %c0_28, %c0_29] : memref<1x128x128xbf16, #tpu.memory_space<vmem>>, vector<1x128x128xbf16>
    %94 = vector.shape_cast %93 : vector<1x128x128xbf16> to vector<128x128xbf16>
    %cst_30 = arith.constant dense<0.000000e+00> : vector<16x128xf32>
    %95 = tpu.matmul %92, %94, %cst_30 {dimension_numbers = #tpu.dot_dimension_numbers<[1], [0], [0], [1], [0, 0, 1, 1], [], []>} : vector<16x128xbf16>, vector<128x128xbf16>, vector<16x128xf32> -> vector<16x128xf32>
    %c0_31 = arith.constant 0 : index
    %c0_32 = arith.constant 0 : index
    %c0_33 = arith.constant 0 : index
    %96 = vector.load %arg7[%c0_31, %c0_32, %c0_33] : memref<1x1x128xf32, #tpu.memory_space<vmem>>, vector<1x1x128xf32>
    %97 = vector.shape_cast %96 : vector<1x1x128xf32> to vector<1x128xf32>
    %98 = vector.broadcast %97 : vector<1x128xf32> to vector<16x128xf32>
    %99 = arith.addf %95, %98 : vector<16x128xf32>
    %100 = arith.addf %3, %99 : vector<16x128xf32>
    %c0_34 = arith.constant 0 : index
    %c0_35 = arith.constant 0 : index
    %c0_36 = arith.constant 0 : index
    %101 = vector.load %arg8[%c0_34, %c0_35, %c0_36] : memref<1x1x128xf32, #tpu.memory_space<vmem>>, vector<1x1x128xf32>
    %102 = vector.shape_cast %101 : vector<1x1x128xf32> to vector<1x128xf32>
    %c0_37 = arith.constant 0 : index
    %c0_38 = arith.constant 0 : index
    %c0_39 = arith.constant 0 : index
    %103 = vector.load %arg9[%c0_37, %c0_38, %c0_39] : memref<1x1x128xf32, #tpu.memory_space<vmem>>, vector<1x1x128xf32>
    %104 = vector.shape_cast %103 : vector<1x1x128xf32> to vector<1x128xf32>
    %cst_40 = arith.constant dense<0.000000e+00> : vector<16xf32>
    %105 = vector.multi_reduction <add>, %100, %cst_40 [1] : vector<16x128xf32> to vector<16xf32>
    %106 = vector.shape_cast %105 : vector<16xf32> to vector<16x1xf32>
    %cst_41 = arith.constant 1.280000e+02 : f32
    %107 = vector.broadcast %cst_41 : f32 to vector<16x1xf32>
    %108 = arith.divf %106, %107 : vector<16x1xf32>
    %109 = vector.broadcast %108 : vector<16x1xf32> to vector<16x128xf32>
    %110 = arith.subf %100, %109 : vector<16x128xf32>
    %111 = arith.mulf %110, %110 : vector<16x128xf32>
    %cst_42 = arith.constant dense<0.000000e+00> : vector<16xf32>
    %112 = vector.multi_reduction <add>, %111, %cst_42 [1] : vector<16x128xf32> to vector<16xf32>
    %113 = vector.shape_cast %112 : vector<16xf32> to vector<16x1xf32>
    %cst_43 = arith.constant 1.280000e+02 : f32
    %114 = vector.broadcast %cst_43 : f32 to vector<16x1xf32>
    %115 = arith.divf %113, %114 : vector<16x1xf32>
    %116 = vector.broadcast %108 : vector<16x1xf32> to vector<16x128xf32>
    %117 = arith.subf %100, %116 : vector<16x128xf32>
    %cst_44 = arith.constant 9.99999974E-6 : f32
    %118 = vector.broadcast %cst_44 : f32 to vector<16x1xf32>
    %119 = arith.addf %115, %118 : vector<16x1xf32>
    %120 = math.rsqrt %119 : vector<16x1xf32>
    %121 = vector.broadcast %120 : vector<16x1xf32> to vector<16x128xf32>
    %122 = arith.mulf %117, %121 : vector<16x128xf32>
    %123 = vector.broadcast %102 : vector<1x128xf32> to vector<16x128xf32>
    %124 = arith.mulf %122, %123 : vector<16x128xf32>
    %125 = vector.broadcast %104 : vector<1x128xf32> to vector<16x128xf32>
    %126 = arith.addf %124, %125 : vector<16x128xf32>
    %127 = arith.truncf %126 : vector<16x128xf32> to vector<16x128xbf16>
    %c0_45 = arith.constant 0 : index
    %c0_46 = arith.constant 0 : index
    %c0_47 = arith.constant 0 : index
    %128 = vector.load %arg10[%c0_45, %c0_46, %c0_47] : memref<1x128x256xbf16, #tpu.memory_space<vmem>>, vector<1x128x256xbf16>
    %129 = vector.shape_cast %128 : vector<1x128x256xbf16> to vector<128x256xbf16>
    %cst_48 = arith.constant dense<0.000000e+00> : vector<16x256xf32>
    %130 = tpu.matmul %127, %129, %cst_48 {dimension_numbers = #tpu.dot_dimension_numbers<[1], [0], [0], [1], [0, 0, 1, 1], [], []>} : vector<16x128xbf16>, vector<128x256xbf16>, vector<16x256xf32> -> vector<16x256xf32>
    %c0_49 = arith.constant 0 : index
    %c0_50 = arith.constant 0 : index
    %c0_51 = arith.constant 0 : index
    %131 = vector.load %arg11[%c0_49, %c0_50, %c0_51] : memref<1x1x256xf32, #tpu.memory_space<vmem>>, vector<1x1x256xf32>
    %132 = vector.shape_cast %131 : vector<1x1x256xf32> to vector<1x256xf32>
    %133 = vector.broadcast %132 : vector<1x256xf32> to vector<16x256xf32>
    %134 = arith.addf %130, %133 : vector<16x256xf32>
    %cst_52 = arith.constant 0.000000e+00 : f32
    %135 = vector.broadcast %cst_52 : f32 to vector<16x256xf32>
    %136 = arith.maximumf %134, %135 : vector<16x256xf32>
    %137 = arith.truncf %136 : vector<16x256xf32> to vector<16x256xbf16>
    %c0_53 = arith.constant 0 : index
    %c0_54 = arith.constant 0 : index
    %c0_55 = arith.constant 0 : index
    %138 = vector.load %arg12[%c0_53, %c0_54, %c0_55] : memref<1x256x128xbf16, #tpu.memory_space<vmem>>, vector<1x256x128xbf16>
    %139 = vector.shape_cast %138 : vector<1x256x128xbf16> to vector<256x128xbf16>
    %cst_56 = arith.constant dense<0.000000e+00> : vector<16x128xf32>
    %140 = tpu.matmul %137, %139, %cst_56 {dimension_numbers = #tpu.dot_dimension_numbers<[1], [0], [0], [1], [0, 0, 1, 1], [], []>} : vector<16x256xbf16>, vector<256x128xbf16>, vector<16x128xf32> -> vector<16x128xf32>
    %c0_57 = arith.constant 0 : index
    %c0_58 = arith.constant 0 : index
    %c0_59 = arith.constant 0 : index
    %141 = vector.load %arg13[%c0_57, %c0_58, %c0_59] : memref<1x1x128xf32, #tpu.memory_space<vmem>>, vector<1x1x128xf32>
    %142 = vector.shape_cast %141 : vector<1x1x128xf32> to vector<1x128xf32>
    %143 = vector.broadcast %142 : vector<1x128xf32> to vector<16x128xf32>
    %144 = arith.addf %140, %143 : vector<16x128xf32>
    %145 = arith.addf %126, %144 : vector<16x128xf32>
    %c0_60 = arith.constant 0 : index
    %c0_61 = arith.constant 0 : index
    %c0_62 = arith.constant 0 : index
    %146 = vector.load %arg14[%c0_60, %c0_61, %c0_62] : memref<1x1x128xf32, #tpu.memory_space<vmem>>, vector<1x1x128xf32>
    %147 = vector.shape_cast %146 : vector<1x1x128xf32> to vector<1x128xf32>
    %c0_63 = arith.constant 0 : index
    %c0_64 = arith.constant 0 : index
    %c0_65 = arith.constant 0 : index
    %148 = vector.load %arg15[%c0_63, %c0_64, %c0_65] : memref<1x1x128xf32, #tpu.memory_space<vmem>>, vector<1x1x128xf32>
    %149 = vector.shape_cast %148 : vector<1x1x128xf32> to vector<1x128xf32>
    %cst_66 = arith.constant dense<0.000000e+00> : vector<16xf32>
    %150 = vector.multi_reduction <add>, %145, %cst_66 [1] : vector<16x128xf32> to vector<16xf32>
    %151 = vector.shape_cast %150 : vector<16xf32> to vector<16x1xf32>
    %cst_67 = arith.constant 1.280000e+02 : f32
    %152 = vector.broadcast %cst_67 : f32 to vector<16x1xf32>
    %153 = arith.divf %151, %152 : vector<16x1xf32>
    %154 = vector.broadcast %153 : vector<16x1xf32> to vector<16x128xf32>
    %155 = arith.subf %145, %154 : vector<16x128xf32>
    %156 = arith.mulf %155, %155 : vector<16x128xf32>
    %cst_68 = arith.constant dense<0.000000e+00> : vector<16xf32>
    %157 = vector.multi_reduction <add>, %156, %cst_68 [1] : vector<16x128xf32> to vector<16xf32>
    %158 = vector.shape_cast %157 : vector<16xf32> to vector<16x1xf32>
    %cst_69 = arith.constant 1.280000e+02 : f32
    %159 = vector.broadcast %cst_69 : f32 to vector<16x1xf32>
    %160 = arith.divf %158, %159 : vector<16x1xf32>
    %161 = vector.broadcast %153 : vector<16x1xf32> to vector<16x128xf32>
    %162 = arith.subf %145, %161 : vector<16x128xf32>
    %cst_70 = arith.constant 9.99999974E-6 : f32
    %163 = vector.broadcast %cst_70 : f32 to vector<16x1xf32>
    %164 = arith.addf %160, %163 : vector<16x1xf32>
    %165 = math.rsqrt %164 : vector<16x1xf32>
    %166 = vector.broadcast %165 : vector<16x1xf32> to vector<16x128xf32>
    %167 = arith.mulf %162, %166 : vector<16x128xf32>
    %168 = vector.broadcast %147 : vector<1x128xf32> to vector<16x128xf32>
    %169 = arith.mulf %167, %168 : vector<16x128xf32>
    %170 = vector.broadcast %149 : vector<1x128xf32> to vector<16x128xf32>
    %171 = arith.addf %169, %170 : vector<16x128xf32>
    %c0_71 = arith.constant 0 : index
    %c0_72 = arith.constant 0 : index
    %172 = vector.load %arg16[%c0_71, %c0_72] : memref<16x128xf32, #tpu.memory_space<vmem>>, vector<16x128xf32>
    tpu.vector_store %arg16[%c0_71, %c0_72], %171 {strides = array<i32>} : memref<16x128xf32, #tpu.memory_space<vmem>>, vector<16x128xf32>,
    return
  }
  func.func @transform_0(%arg0: i32, %arg1: i32) -> (i32, i32) {
    %c0_i32 = arith.constant 0 : i32
    %c0_i32_0 = arith.constant 0 : i32
    return %arg0, %c0_i32 : i32, i32
  }
  func.func @transform_1(%arg0: i32, %arg1: i32) -> (i32, i32, i32) {
    %c0_i32 = arith.constant 0 : i32
    %c0_i32_0 = arith.constant 0 : i32
    %c0_i32_1 = arith.constant 0 : i32
    return %arg0, %c0_i32, %c0_i32_0 : i32, i32, i32
  }
  func.func @transform_2(%arg0: i32, %arg1: i32) -> (i32, i32, i32) {
    %c0_i32 = arith.constant 0 : i32
    %c0_i32_0 = arith.constant 0 : i32
    %c0_i32_1 = arith.constant 0 : i32
    return %arg1, %c0_i32, %c0_i32_0 : i32, i32, i32
  }
  func.func @transform_3(%arg0: i32, %arg1: i32) -> (i32, i32, i32) {
    %c0_i32 = arith.constant 0 : i32
    %c0_i32_0 = arith.constant 0 : i32
    %c0_i32_1 = arith.constant 0 : i32
    return %arg1, %c0_i32, %c0_i32_0 : i32, i32, i32
  }
  func.func @transform_4(%arg0: i32, %arg1: i32) -> (i32, i32, i32) {
    %c0_i32 = arith.constant 0 : i32
    %c0_i32_0 = arith.constant 0 : i32
    %c0_i32_1 = arith.constant 0 : i32
    return %arg1, %c0_i32, %c0_i32_0 : i32, i32, i32
  }
  func.func @transform_5(%arg0: i32, %arg1: i32) -> (i32, i32, i32) {
    %c0_i32 = arith.constant 0 : i32
    %c0_i32_0 = arith.constant 0 : i32
    %c0_i32_1 = arith.constant 0 : i32
    return %arg1, %c0_i32, %c0_i32_0 : i32, i32, i32
  }
  func.func @transform_6(%arg0: i32, %arg1: i32) -> (i32, i32, i32) {
    %c0_i32 = arith.constant 0 : i32
    %c0_i32_0 = arith.constant 0 : i32
    %c0_i32_1 = arith.constant 0 : i32
    return %arg1, %c0_i32, %c0_i32_0 : i32, i32, i32
  }
  func.func @transform_7(%arg0: i32, %arg1: i32) -> (i32, i32, i32) {
    %c0_i32 = arith.constant 0 : i32
    %c0_i32_0 = arith.constant 0 : i32
    %c0_i32_1 = arith.constant 0 : i32
    return %arg1, %c0_i32, %c0_i32_0 : i32, i32, i32
  }
  func.func @transform_8(%arg0: i32, %arg1: i32) -> (i32, i32, i32) {
    %c0_i32 = arith.constant 0 : i32
    %c0_i32_0 = arith.constant 0 : i32
    %c0_i32_1 = arith.constant 0 : i32
    return %arg1, %c0_i32, %c0_i32_0 : i32, i32, i32
  }
  func.func @transform_9(%arg0: i32, %arg1: i32) -> (i32, i32, i32) {
    %c0_i32 = arith.constant 0 : i32
    %c0_i32_0 = arith.constant 0 : i32
    %c0_i32_1 = arith.constant 0 : i32
    return %arg1, %c0_i32, %c0_i32_0 : i32, i32, i32
  }
  func.func @transform_10(%arg0: i32, %arg1: i32) -> (i32, i32, i32) {
    %c0_i32 = arith.constant 0 : i32
    %c0_i32_0 = arith.constant 0 : i32
    %c0_i32_1 = arith.constant 0 : i32
    return %arg1, %c0_i32, %c0_i32_0 : i32, i32, i32
  }
  func.func @transform_11(%arg0: i32, %arg1: i32) -> (i32, i32, i32) {
    %c0_i32 = arith.constant 0 : i32
    %c0_i32_0 = arith.constant 0 : i32
    %c0_i32_1 = arith.constant 0 : i32
    return %arg1, %c0_i32, %c0_i32_0 : i32, i32, i32
  }
  func.func @transform_12(%arg0: i32, %arg1: i32) -> (i32, i32, i32) {
    %c0_i32 = arith.constant 0 : i32
    %c0_i32_0 = arith.constant 0 : i32
    %c0_i32_1 = arith.constant 0 : i32
    return %arg1, %c0_i32, %c0_i32_0 : i32, i32, i32
  }
  func.func @transform_13(%arg0: i32, %arg1: i32) -> (i32, i32, i32) {
    %c0_i32 = arith.constant 0 : i32
    %c0_i32_0 = arith.constant 0 : i32
    %c0_i32_1 = arith.constant 0 : i32
    return %arg1, %c0_i32, %c0_i32_0 : i32, i32, i32
  }
  func.func @transform_14(%arg0: i32, %arg1: i32) -> (i32, i32) {
    %c0_i32 = arith.constant 0 : i32
    %c0_i32_0 = arith.constant 0 : i32
    return %arg0, %c0_i32 : i32, i32
  }
}

</mosaic_0001>

<llo_original>
// kernel: tpu_custom_call.1
$region0: #{tpu_custom_call.1}
  #allocation0 [shape = 'u32[]', space=smem, size = 0x4, offset = 0x4, fixed_abs, tag = 'smem constant byte address 0x4 - core index']
  #allocation1 [shape = 'u32[72,128]{1,0:T(1,128)}', space=vmem, size = 0x9000, scoped, tag = 'internal scratch']
  %s0 = inlined_call_operand.hbm [shape: f32[16,128], index: 0, kind: input, shape index: {}]
  %s1 = inlined_call_operand.hbm [shape: f32[2,1,8], index: 1, kind: input, shape index: {}]
  %s2 = inlined_call_operand.hbm [shape: bf16[2,128,384], index: 2, kind: input, shape index: {}]
  %s3 = inlined_call_operand.hbm [shape: f32[2,1,384], index: 3, kind: input, shape index: {}]
  %s4 = inlined_call_operand.hbm [shape: bf16[2,128,128], index: 4, kind: input, shape index: {}]
  %s5 = inlined_call_operand.vmem [shape: f32[2,1,128], index: 5, kind: input, shape index: {}]
  %s6 = inlined_call_operand.hbm [shape: f32[2,1,128], index: 6, kind: input, shape index: {}]
  %s7 = inlined_call_operand.hbm [shape: f32[2,1,128], index: 7, kind: input, shape index: {}]
  %s8 = inlined_call_operand.hbm [shape: bf16[2,128,256], index: 8, kind: input, shape index: {}]
  %s9 = inlined_call_operand.vmem [shape: f32[2,1,256], index: 9, kind: input, shape index: {}]
  %s10 = inlined_call_operand.hbm [shape: bf16[2,256,128], index: 10, kind: input, shape index: {}]
  %s11 = inlined_call_operand.vmem [shape: f32[2,1,128], index: 11, kind: input, shape index: {}]
  %s12 = inlined_call_operand.vmem [shape: f32[2,1,128], index: 12, kind: input, shape index: {}]
  %s13 = inlined_call_operand.vmem [shape: f32[2,1,128], index: 13, kind: input, shape index: {}]
  %s14 = inlined_call_operand.hbm [shape: f32[16,128], index: 14, kind: output, shape index: {}]
  %s15 = sld [smem:[#allocation0]]
  $region129: #{tpu_custom_call.1} parent=0
    _
  %s17 = ssub.s32 1, %s15
  %s18 = scalar_select 0, %s17, %s15
  $region1: #{tpu_custom_call.1} parent=0
    #allocation2 [shape = 'u8[8192]{0}', space=vmem, size = 0x2000, scoped, tag = 'input window, operand 0, single buffered']
    #allocation3 [shape = 's32[2]{0}', space=sflag, size = 0x8, scoped, tag = 'scoped memory for tpu_custom_call.1']
    #allocation4 [shape = 's32[2]{0}', space=sflag, size = 0x8, scoped, tag = 'scoped memory for tpu_custom_call.1']
    #allocation5 [shape = 'u8[1024]{0}', space=vmem, size = 0x400, scoped, tag = 'input window, operand 1, single buffered']
    #allocation6 [shape = 's32[1]{0}', space=sflag, size = 0x4, scoped, tag = 'scoped memory for tpu_custom_call.1']
    #allocation7 [shape = 'u8[196608]{0}', space=vmem, size = 0x30000, scoped, tag = 'input window, operand 2']
    #allocation8 [shape = 'u8[3072]{0}', space=vmem, size = 0xc00, scoped, tag = 'input window, operand 3']
    #allocation9 [shape = 'u8[65536]{0}', space=vmem, size = 0x10000, scoped, tag = 'input window, operand 4']
    #allocation10 [shape = 'u8[1024]{0}', space=vmem, size = 0x400, scoped, tag = 'input window, operand 6']
    #allocation11 [shape = 'u8[1024]{0}', space=vmem, size = 0x400, scoped, tag = 'input window, operand 7']
    #allocation12 [shape = 'u8[131072]{0}', space=vmem, size = 0x20000, scoped, tag = 'input window, operand 8']
    #allocation13 [shape = 'u8[131072]{0}', space=vmem, size = 0x20000, scoped, tag = 'input window, operand 10']
    #allocation14 [shape = 'u8[8192]{0}', space=vmem, size = 0x2000, scoped, tag = 'output window, operand 0, single buffered']
    %19 = vsyncpa [#allocation3], 0
    %20 = vsyncpa [#allocation6], 0
    %21 = vsyncpa [#allocation4], 0
    loop: start=0, step=1, limit=4
    $region2: #{tpu_custom_call.1} parent=1 // loop_pre_header
      _
    $region3: #{tpu_custom_call.1} parent=1 // loop_header
      %s23 = sphi 0, %s27
      %p24 = scmp.ge.s32.totalorder %s23, 4
      %s30 = sphi 0, %s42
      %s31 = sphi 0, %s38
      %s32 = sphi 0, %s30
      %s33 = sphi 0, %s31
      %s34 = sphi 0, %s32
      %s35 = sphi 0, %s33
      %s45 = sphi 0, %s47
      %s48 = sphi 0, %s45
      %s49 = sphi 0, %s48
      %s65 = sphi 0, %s49
      %s71 = sphi 0, %s73
      %s74 = sphi 0, %s71
      %s75 = sphi 0, %s74
      %s91 = sphi 0, %s75
      %s97 = sphi 0, %s99
      %s100 = sphi 0, %s97
      %s101 = sphi 0, %s100
      %s117 = sphi 0, %s101
      %s123 = sphi 0, %s125
      %s126 = sphi 0, %s123
      %s127 = sphi 0, %s126
      %s143 = sphi 0, %s127
      %s149 = sphi 0, %s151
      %s152 = sphi 0, %s149
      %s153 = sphi 0, %s152
      %s169 = sphi 0, %s153
      %s175 = sphi 0, %s177
      %s178 = sphi 0, %s175
      %s179 = sphi 0, %s178
      %s195 = sphi 0, %s179
      %s201 = sphi 0, %s203
      %s204 = sphi 0, %s201
      %s205 = sphi 0, %s204
      %s221 = sphi 0, %s205
      %s227 = sphi 0, %s229
      %s230 = sphi 0, %s227
      %s231 = sphi 0, %s230
      %s247 = sphi 0, %s231
      %s253 = sphi 0, %s255
      %s256 = sphi 0, %s253
      %s257 = sphi 0, %s256
      %s273 = sphi 0, %s257
      %s279 = sphi 0, %s281
      %s282 = sphi 0, %s279
      %s283 = sphi 0, %s282
      %s299 = sphi 0, %s283
      %s305 = sphi 0, %s307
      %s308 = sphi 0, %s305
      %s309 = sphi 0, %s308
      %s325 = sphi 0, %s309
      %s331 = sphi 0, %s333
      %s334 = sphi 0, %s331
      %s335 = sphi 0, %s334
      %s351 = sphi 0, %s335
      %s357 = sphi 0, %s359
      %s360 = sphi 0, %s357
      %s361 = sphi 0, %s360
      %s377 = sphi 0, %s361
      %s383 = sphi 0, %s385
      %s386 = sphi 0, %s383
      %s387 = sphi 0, %s386
      %s403 = sphi 0, %s387
      %s409 = sphi 0, %s411
      %s412 = sphi 0, %s409
      %s413 = sphi 0, %s412
      %s429 = sphi 0, %s413
    $region4: #{tpu_custom_call.1} parent=1 // loop_header_branch
      %26 = sbr.rel (%p24) target = $region8
    $region5: #{tpu_custom_call.1} parent=1 // loop_body
      %s28 = ssub.s32 %s23, 1
      %s29 = ssub.s32 %s23, 2
      %s36 = sadd.s32 1, %s31
      %p37 = scmp.ge.s32.totalorder %s36, 2
      %s38 = scalar_select %p37, 0, %s36
      %s39 = sadd.s32 1, %s30
      %s40 = scalar_select %p37, %s39, %s30
      %p41 = scmp.ge.s32.totalorder %s40, 1
      %s42 = scalar_select %p41, 0, %s40
      %s43 = ssub.s32 %s30, %s42
      %p44 = scmp.eq.s32.totalorder %s43, 0
      %s46 = sadd.s32 %s45, 1
      %s47 = scalar_select %p44, %s45, %s46
      %p50 = pneg %p44
      %p51 = scmp.eq.s32.totalorder %s23, 1
      %p52 = por %p50, %p51
      %p53 = scmp.ne.s32.totalorder %s45, %s48
      %p54 = scmp.eq.s32.totalorder %s23, 0
      %p55 = por %p53, %p54
      %p56 = scmp.ne.s32.totalorder %s45, %s48
      %p57 = scmp.eq.s32.totalorder %s28, 1
      %p58 = por %p56, %p57
      %p59 = scmp.ne.s32.totalorder %s48, %s49
      %p60 = scmp.eq.s32.totalorder %s28, 0
      %p61 = por %p59, %p60
      %p62 = scmp.ne.s32.totalorder %s48, %s49
      %p63 = scmp.eq.s32.totalorder %s29, 1
      %p64 = por %p62, %p63
      %p66 = scmp.ne.s32.totalorder %s49, %s65
      %p67 = scmp.eq.s32.totalorder %s29, 0
      %p68 = por %p66, %p67
      %s69 = ssub.s32 %s30, %s42
      %p70 = scmp.eq.s32.totalorder %s69, 0
      %s72 = sadd.s32 %s71, 1
      %s73 = scalar_select %p70, %s71, %s72
      %p76 = pneg %p70
      %p77 = scmp.eq.s32.totalorder %s23, 1
      %p78 = por %p76, %p77
      %p79 = scmp.ne.s32.totalorder %s71, %s74
      %p80 = scmp.eq.s32.totalorder %s23, 0
      %p81 = por %p79, %p80
      %p82 = scmp.ne.s32.totalorder %s71, %s74
      %p83 = scmp.eq.s32.totalorder %s28, 1
      %p84 = por %p82, %p83
      %p85 = scmp.ne.s32.totalorder %s74, %s75
      %p86 = scmp.eq.s32.totalorder %s28, 0
      %p87 = por %p85, %p86
      %p88 = scmp.ne.s32.totalorder %s74, %s75
      %p89 = scmp.eq.s32.totalorder %s29, 1
      %p90 = por %p88, %p89
      %p92 = scmp.ne.s32.totalorder %s75, %s91
      %p93 = scmp.eq.s32.totalorder %s29, 0
      %p94 = por %p92, %p93
      %s95 = ssub.s32 %s31, %s38
      %p96 = scmp.eq.s32.totalorder %s95, 0
      %s98 = sadd.s32 %s97, 1
      %s99 = scalar_select %p96, %s97, %s98
      %p102 = pneg %p96
      %p103 = scmp.eq.s32.totalorder %s23, 1
      %p104 = por %p102, %p103
      %p105 = scmp.ne.s32.totalorder %s97, %s100
      %p106 = scmp.eq.s32.totalorder %s23, 0
      %p107 = por %p105, %p106
      %p108 = scmp.ne.s32.totalorder %s97, %s100
      %p109 = scmp.eq.s32.totalorder %s28, 1
      %p110 = por %p108, %p109
      %p111 = scmp.ne.s32.totalorder %s100, %s101
      %p112 = scmp.eq.s32.totalorder %s28, 0
      %p113 = por %p111, %p112
      %p114 = scmp.ne.s32.totalorder %s100, %s101
      %p115 = scmp.eq.s32.totalorder %s29, 1
      %p116 = por %p114, %p115
      %p118 = scmp.ne.s32.totalorder %s101, %s117
      %p119 = scmp.eq.s32.totalorder %s29, 0
      %p120 = por %p118, %p119
      %s121 = ssub.s32 %s31, %s38
      %p122 = scmp.eq.s32.totalorder %s121, 0
      %s124 = sadd.s32 %s123, 1
      %s125 = scalar_select %p122, %s123, %s124
      %p128 = pneg %p122
      %p129 = scmp.eq.s32.totalorder %s23, 1
      %p130 = por %p128, %p129
      %p131 = scmp.ne.s32.totalorder %s123, %s126
      %p132 = scmp.eq.s32.totalorder %s23, 0
      %p133 = por %p131, %p132
      %p134 = scmp.ne.s32.totalorder %s123, %s126
      %p135 = scmp.eq.s32.totalorder %s28, 1
      %p136 = por %p134, %p135
      %p137 = scmp.ne.s32.totalorder %s126, %s127
      %p138 = scmp.eq.s32.totalorder %s28, 0
      %p139 = por %p137, %p138
      %p140 = scmp.ne.s32.totalorder %s126, %s127
      %p141 = scmp.eq.s32.totalorder %s29, 1
      %p142 = por %p140, %p141
      %p144 = scmp.ne.s32.totalorder %s127, %s143
      %p145 = scmp.eq.s32.totalorder %s29, 0
      %p146 = por %p144, %p145
      %s147 = ssub.s32 %s31, %s38
      %p148 = scmp.eq.s32.totalorder %s147, 0
      %s150 = sadd.s32 %s149, 1
      %s151 = scalar_select %p148, %s149, %s150
      %p154 = pneg %p148
      %p155 = scmp.eq.s32.totalorder %s23, 1
      %p156 = por %p154, %p155
      %p157 = scmp.ne.s32.totalorder %s149, %s152
      %p158 = scmp.eq.s32.totalorder %s23, 0
      %p159 = por %p157, %p158
      %p160 = scmp.ne.s32.totalorder %s149, %s152
      %p161 = scmp.eq.s32.totalorder %s28, 1
      %p162 = por %p160, %p161
      %p163 = scmp.ne.s32.totalorder %s152, %s153
      %p164 = scmp.eq.s32.totalorder %s28, 0
      %p165 = por %p163, %p164
      %p166 = scmp.ne.s32.totalorder %s152, %s153
      %p167 = scmp.eq.s32.totalorder %s29, 1
      %p168 = por %p166, %p167
      %p170 = scmp.ne.s32.totalorder %s153, %s169
      %p171 = scmp.eq.s32.totalorder %s29, 0
      %p172 = por %p170, %p171
      %s173 = ssub.s32 %s31, %s38
      %p174 = scmp.eq.s32.totalorder %s173, 0
      %s176 = sadd.s32 %s175, 1
      %s177 = scalar_select %p174, %s175, %s176
      %p180 = pneg %p174
      %p181 = scmp.eq.s32.totalorder %s23, 1
      %p182 = por %p180, %p181
      %p183 = scmp.ne.s32.totalorder %s175, %s178
      %p184 = scmp.eq.s32.totalorder %s23, 0
      %p185 = por %p183, %p184
      %p186 = scmp.ne.s32.totalorder %s175, %s178
      %p187 = scmp.eq.s32.totalorder %s28, 1
      %p188 = por %p186, %p187
      %p189 = scmp.ne.s32.totalorder %s178, %s179
      %p190 = scmp.eq.s32.totalorder %s28, 0
      %p191 = por %p189, %p190
      %p192 = scmp.ne.s32.totalorder %s178, %s179
      %p193 = scmp.eq.s32.totalorder %s29, 1
      %p194 = por %p192, %p193
      %p196 = scmp.ne.s32.totalorder %s179, %s195
      %p197 = scmp.eq.s32.totalorder %s29, 0
      %p198 = por %p196, %p197
      %s199 = ssub.s32 %s31, %s38
      %p200 = scmp.eq.s32.totalorder %s199, 0
      %s202 = sadd.s32 %s201, 1
      %s203 = scalar_select %p200, %s201, %s202
      %p206 = pneg %p200
      %p207 = scmp.eq.s32.totalorder %s23, 1
      %p208 = por %p206, %p207
      %p209 = scmp.ne.s32.totalorder %s201, %s204
      %p210 = scmp.eq.s32.totalorder %s23, 0
      %p211 = por %p209, %p210
      %p212 = scmp.ne.s32.totalorder %s201, %s204
      %p213 = scmp.eq.s32.totalorder %s28, 1
      %p214 = por %p212, %p213
      %p215 = scmp.ne.s32.totalorder %s204, %s205
      %p216 = scmp.eq.s32.totalorder %s28, 0
      %p217 = por %p215, %p216
      %p218 = scmp.ne.s32.totalorder %s204, %s205
      %p219 = scmp.eq.s32.totalorder %s29, 1
      %p220 = por %p218, %p219
      %p222 = scmp.ne.s32.totalorder %s205, %s221
      %p223 = scmp.eq.s32.totalorder %s29, 0
      %p224 = por %p222, %p223
      %s225 = ssub.s32 %s31, %s38
      %p226 = scmp.eq.s32.totalorder %s225, 0
      %s228 = sadd.s32 %s227, 1
      %s229 = scalar_select %p226, %s227, %s228
      %p232 = pneg %p226
      %p233 = scmp.eq.s32.totalorder %s23, 1
      %p234 = por %p232, %p233
      %p235 = scmp.ne.s32.totalorder %s227, %s230
      %p236 = scmp.eq.s32.totalorder %s23, 0
      %p237 = por %p235, %p236
      %p238 = scmp.ne.s32.totalorder %s227, %s230
      %p239 = scmp.eq.s32.totalorder %s28, 1
      %p240 = por %p238, %p239
      %p241 = scmp.ne.s32.totalorder %s230, %s231
      %p242 = scmp.eq.s32.totalorder %s28, 0
      %p243 = por %p241, %p242
      %p244 = scmp.ne.s32.totalorder %s230, %s231
      %p245 = scmp.eq.s32.totalorder %s29, 1
      %p246 = por %p244, %p245
      %p248 = scmp.ne.s32.totalorder %s231, %s247
      %p249 = scmp.eq.s32.totalorder %s29, 0
      %p250 = por %p248, %p249
      %s251 = ssub.s32 %s31, %s38
      %p252 = scmp.eq.s32.totalorder %s251, 0
      %s254 = sadd.s32 %s253, 1
      %s255 = scalar_select %p252, %s253, %s254
      %p258 = pneg %p252
      %p259 = scmp.eq.s32.totalorder %s23, 1
      %p260 = por %p258, %p259
      %p261 = scmp.ne.s32.totalorder %s253, %s256
      %p262 = scmp.eq.s32.totalorder %s23, 0
      %p263 = por %p261, %p262
      %p264 = scmp.ne.s32.totalorder %s253, %s256
      %p265 = scmp.eq.s32.totalorder %s28, 1
      %p266 = por %p264, %p265
      %p267 = scmp.ne.s32.totalorder %s256, %s257
      %p268 = scmp.eq.s32.totalorder %s28, 0
      %p269 = por %p267, %p268
      %p270 = scmp.ne.s32.totalorder %s256, %s257
      %p271 = scmp.eq.s32.totalorder %s29, 1
      %p272 = por %p270, %p271
      %p274 = scmp.ne.s32.totalorder %s257, %s273
      %p275 = scmp.eq.s32.totalorder %s29, 0
      %p276 = por %p274, %p275
      %s277 = ssub.s32 %s31, %s38
      %p278 = scmp.eq.s32.totalorder %s277, 0
      %s280 = sadd.s32 %s279, 1
      %s281 = scalar_select %p278, %s279, %s280
      %p284 = pneg %p278
      %p285 = scmp.eq.s32.totalorder %s23, 1
      %p286 = por %p284, %p285
      %p287 = scmp.ne.s32.totalorder %s279, %s282
      %p288 = scmp.eq.s32.totalorder %s23, 0
      %p289 = por %p287, %p288
      %p290 = scmp.ne.s32.totalorder %s279, %s282
      %p291 = scmp.eq.s32.totalorder %s28, 1
      %p292 = por %p290, %p291
      %p293 = scmp.ne.s32.totalorder %s282, %s283
      %p294 = scmp.eq.s32.totalorder %s28, 0
      %p295 = por %p293, %p294
      %p296 = scmp.ne.s32.totalorder %s282, %s283
      %p297 = scmp.eq.s32.totalorder %s29, 1
      %p298 = por %p296, %p297
      %p300 = scmp.ne.s32.totalorder %s283, %s299
      %p301 = scmp.eq.s32.totalorder %s29, 0
      %p302 = por %p300, %p301
      %s303 = ssub.s32 %s31, %s38
      %p304 = scmp.eq.s32.totalorder %s303, 0
      %s306 = sadd.s32 %s305, 1
      %s307 = scalar_select %p304, %s305, %s306
      %p310 = pneg %p304
      %p311 = scmp.eq.s32.totalorder %s23, 1
      %p312 = por %p310, %p311
      %p313 = scmp.ne.s32.totalorder %s305, %s308
      %p314 = scmp.eq.s32.totalorder %s23, 0
      %p315 = por %p313, %p314
      %p316 = scmp.ne.s32.totalorder %s305, %s308
      %p317 = scmp.eq.s32.totalorder %s28, 1
      %p318 = por %p316, %p317
      %p319 = scmp.ne.s32.totalorder %s308, %s309
      %p320 = scmp.eq.s32.totalorder %s28, 0
      %p321 = por %p319, %p320
      %p322 = scmp.ne.s32.totalorder %s308, %s309
      %p323 = scmp.eq.s32.totalorder %s29, 1
      %p324 = por %p322, %p323
      %p326 = scmp.ne.s32.totalorder %s309, %s325
      %p327 = scmp.eq.s32.totalorder %s29, 0
      %p328 = por %p326, %p327
      %s329 = ssub.s32 %s31, %s38
      %p330 = scmp.eq.s32.totalorder %s329, 0
      %s332 = sadd.s32 %s331, 1
      %s333 = scalar_select %p330, %s331, %s332
      %p336 = pneg %p330
      %p337 = scmp.eq.s32.totalorder %s23, 1
      %p338 = por %p336, %p337
      %p339 = scmp.ne.s32.totalorder %s331, %s334
      %p340 = scmp.eq.s32.totalorder %s23, 0
      %p341 = por %p339, %p340
      %p342 = scmp.ne.s32.totalorder %s331, %s334
      %p343 = scmp.eq.s32.totalorder %s28, 1
      %p344 = por %p342, %p343
      %p345 = scmp.ne.s32.totalorder %s334, %s335
      %p346 = scmp.eq.s32.totalorder %s28, 0
      %p347 = por %p345, %p346
      %p348 = scmp.ne.s32.totalorder %s334, %s335
      %p349 = scmp.eq.s32.totalorder %s29, 1
      %p350 = por %p348, %p349
      %p352 = scmp.ne.s32.totalorder %s335, %s351
      %p353 = scmp.eq.s32.totalorder %s29, 0
      %p354 = por %p352, %p353
      %s355 = ssub.s32 %s31, %s38
      %p356 = scmp.eq.s32.totalorder %s355, 0
      %s358 = sadd.s32 %s357, 1
      %s359 = scalar_select %p356, %s357, %s358
      %p362 = pneg %p356
      %p363 = scmp.eq.s32.totalorder %s23, 1
      %p364 = por %p362, %p363
      %p365 = scmp.ne.s32.totalorder %s357, %s360
      %p366 = scmp.eq.s32.totalorder %s23, 0
      %p367 = por %p365, %p366
      %p368 = scmp.ne.s32.totalorder %s357, %s360
      %p369 = scmp.eq.s32.totalorder %s28, 1
      %p370 = por %p368, %p369
      %p371 = scmp.ne.s32.totalorder %s360, %s361
      %p372 = scmp.eq.s32.totalorder %s28, 0
      %p373 = por %p371, %p372
      %p374 = scmp.ne.s32.totalorder %s360, %s361
      %p375 = scmp.eq.s32.totalorder %s29, 1
      %p376 = por %p374, %p375
      %p378 = scmp.ne.s32.totalorder %s361, %s377
      %p379 = scmp.eq.s32.totalorder %s29, 0
      %p380 = por %p378, %p379
      %s381 = ssub.s32 %s31, %s38
      %p382 = scmp.eq.s32.totalorder %s381, 0
      %s384 = sadd.s32 %s383, 1
      %s385 = scalar_select %p382, %s383, %s384
      %p388 = pneg %p382
      %p389 = scmp.eq.s32.totalorder %s23, 1
      %p390 = por %p388, %p389
      %p391 = scmp.ne.s32.totalorder %s383, %s386
      %p392 = scmp.eq.s32.totalorder %s23, 0
      %p393 = por %p391, %p392
      %p394 = scmp.ne.s32.totalorder %s383, %s386
      %p395 = scmp.eq.s32.totalorder %s28, 1
      %p396 = por %p394, %p395
      %p397 = scmp.ne.s32.totalorder %s386, %s387
      %p398 = scmp.eq.s32.totalorder %s28, 0
      %p399 = por %p397, %p398
      %p400 = scmp.ne.s32.totalorder %s386, %s387
      %p401 = scmp.eq.s32.totalorder %s29, 1
      %p402 = por %p400, %p401
      %p404 = scmp.ne.s32.totalorder %s387, %s403
      %p405 = scmp.eq.s32.totalorder %s29, 0
      %p406 = por %p404, %p405
      %s407 = ssub.s32 %s30, %s42
      %p408 = scmp.eq.s32.totalorder %s407, 0
      %s410 = sadd.s32 %s409, 1
      %s411 = scalar_select %p408, %s409, %s410
      %p414 = pneg %p408
      %p415 = scmp.eq.s32.totalorder %s23, 1
      %p416 = por %p414, %p415
      %p417 = scmp.ne.s32.totalorder %s409, %s412
      %p418 = scmp.eq.s32.totalorder %s23, 0
      %p419 = por %p417, %p418
      %p420 = scmp.ne.s32.totalorder %s409, %s412
      %p421 = scmp.eq.s32.totalorder %s28, 1
      %p422 = por %p420, %p421
      %p423 = scmp.ne.s32.totalorder %s412, %s413
      %p424 = scmp.eq.s32.totalorder %s28, 0
      %p425 = por %p423, %p424
      %p426 = scmp.ne.s32.totalorder %s412, %s413
      %p427 = scmp.eq.s32.totalorder %s29, 1
      %p428 = por %p426, %p427
      %p430 = scmp.ne.s32.totalorder %s413, %s429
      %p431 = scmp.eq.s32.totalorder %s29, 0
      %p432 = por %p430, %p431
      %p433 = scmp.le.s32.totalorder 1, %s23
      %p434 = scmp.lt.s32.totalorder %s23, 3
      %p435 = pnand %p433, %p434
      %p436 = pneg %p435
      // Predicated region
      $region9: #{tpu_custom_call.1} parent=5 // pred_check
        _
      $region10: #{tpu_custom_call.1} parent=5 // pred_check_branch
        %438 = sbr.rel (%p435) target = $region12
      $region11: #{tpu_custom_call.1} parent=5 // pred_region
        %s439 = ssub.s32 %s23, 1
        // Predicated region
        $region13: #{tpu_custom_call.1} parent=11 // pred_check
          %p440 = pneg %p61
        $region14: #{tpu_custom_call.1} parent=11 // pred_check_branch
          %442 = sbr.rel (%p440) target = $region16
        $region15: #{tpu_custom_call.1} parent=11 // pred_region
          %s443 = smul.u32 2, %s32
          %445 = vsyncadd [#allocation3], 0
          %s446 = smul.addr %s443, 8
          %s447 = scalar_lea.hbm %s0, %s446
          %s448 = sshll.u32 %s447, 4
          %s449 = int_to_ptr.hbm [resolvable:$true] %s448
          %s450 = sshll.u32 [#allocation2], 4
          %s451 = int_to_ptr.vmem [resolvable:$true] %s450
          %456 = dma.hbm_to_vmem [thread:$0]  %s449, 256, %s451, [#allocation3], 128, 128, 8
        $region16: #{tpu_custom_call.1} parent=11 // pred_fallthru
          _
        // Predicated region
        $region17: #{tpu_custom_call.1} parent=11 // pred_check
          %p457 = pneg %p87
        $region18: #{tpu_custom_call.1} parent=11 // pred_check_branch
          %459 = sbr.rel (%p457) target = $region20
        $region19: #{tpu_custom_call.1} parent=11 // pred_region
          %s460 = smul.u32 2, %s32
          %462 = vsyncadd [#allocation6], 0
          %s463 = scalar_lea.hbm %s1, %s460
          %s464 = sshll.u32 %s463, 4
          %s465 = int_to_ptr.hbm [resolvable:$true] %s464
          %s466 = sshll.u32 [#allocation5], 4
          %s467 = int_to_ptr.vmem [resolvable:$true] %s466
          %472 = dma.hbm_to_vmem [thread:$0]  %s465, 32, %s467, [#allocation6], 16, 16, 1
        $region20: #{tpu_custom_call.1} parent=11 // pred_fallthru
          _
      $region12: #{tpu_custom_call.1} parent=5 // pred_fallthru
        _
      %p473 = scmp.lt.s32.totalorder %s23, 2
      // Predicated region
      $region21: #{tpu_custom_call.1} parent=5 // pred_check
        %p474 = pneg %p473
      $region22: #{tpu_custom_call.1} parent=5 // pred_check_branch
        %476 = sbr.rel (%p474) target = $region24
      $region23: #{tpu_custom_call.1} parent=5 // pred_region
        // Predicated region
        $region25: #{tpu_custom_call.1} parent=23 // pred_check
          %p477 = pneg %p107
        $region26: #{tpu_custom_call.1} parent=23 // pred_check_branch
          %479 = sbr.rel (%p477) target = $region28
        $region27: #{tpu_custom_call.1} parent=23 // pred_region
          %s480 = sand.u32 %s23, 1
          %s481 = scalar_lea.sflag [#allocation3], %s480
          %s482 = sand.u32 %s97, 1
          %s483 = smul.addr %s482, 192
          %s484 = scalar_lea.vmem [#allocation7], %s483
          %486 = vsyncadd %s481, 0
          %s487 = smul.addr %s31, 48
          %s488 = smul.addr %s487, 4
          %s489 = scalar_lea.hbm %s2, %s488
          %s490 = sshll.u32 %s489, 4
          %s491 = int_to_ptr.hbm [resolvable:$true] %s490
          %s492 = sshll.u32 %s484, 4
          %s493 = int_to_ptr.vmem [resolvable:$true] %s492
          %498 = dma.hbm_to_vmem [thread:$0]  %s491, 3072, %s493, %s481, 192, 192, 12
        $region28: #{tpu_custom_call.1} parent=23 // pred_fallthru
          _
        // Predicated region
        $region29: #{tpu_custom_call.1} parent=23 // pred_check
          %p499 = pneg %p133
        $region30: #{tpu_custom_call.1} parent=23 // pred_check_branch
          %501 = sbr.rel (%p499) target = $region32
        $region31: #{tpu_custom_call.1} parent=23 // pred_region
          %s502 = sand.u32 %s23, 1
          %s503 = scalar_lea.sflag [#allocation3], %s502
          %s504 = sand.u32 %s123, 1
          %s505 = smul.addr %s504, 3
          %s506 = scalar_lea.vmem [#allocation8], %s505
          %508 = vsyncadd %s503, 0
          %s509 = smul.addr %s31, 3
          %s510 = scalar_lea.hbm %s3, %s509
          %s512 = sshll.u32 %s510, 4
          %s513 = int_to_ptr.hbm [resolvable:$true] %s512
          %s514 = sshll.u32 %s506, 4
          %s515 = int_to_ptr.vmem [resolvable:$true] %s514
          %517 = dma.hbm_to_vmem [thread:$0]  %s513, 48, %s515, %s503
        $region32: #{tpu_custom_call.1} parent=23 // pred_fallthru
          _
        // Predicated region
        $region33: #{tpu_custom_call.1} parent=23 // pred_check
          %p518 = pneg %p159
        $region34: #{tpu_custom_call.1} parent=23 // pred_check_branch
          %520 = sbr.rel (%p518) target = $region36
        $region35: #{tpu_custom_call.1} parent=23 // pred_region
          %s521 = sand.u32 %s23, 1
          %s522 = scalar_lea.sflag [#allocation3], %s521
          %s523 = sand.u32 %s149, 1
          %s524 = smul.addr %s523, 64
          %s525 = scalar_lea.vmem [#allocation9], %s524
          %527 = vsyncadd %s522, 0
          %s528 = smul.addr %s31, 16
          %s529 = smul.addr %s528, 4
          %s530 = scalar_lea.hbm %s4, %s529
          %s531 = sshll.u32 %s530, 4
          %s532 = int_to_ptr.hbm [resolvable:$true] %s531
          %s533 = sshll.u32 %s525, 4
          %s534 = int_to_ptr.vmem [resolvable:$true] %s533
          %539 = dma.hbm_to_vmem [thread:$0]  %s532, 1024, %s534, %s522, 64, 64, 4
        $region36: #{tpu_custom_call.1} parent=23 // pred_fallthru
          _
        // Predicated region
        $region37: #{tpu_custom_call.1} parent=23 // pred_check
          %p540 = pneg %p185
        $region38: #{tpu_custom_call.1} parent=23 // pred_check_branch
          %542 = sbr.rel (%p540) target = $region40
        $region39: #{tpu_custom_call.1} parent=23 // pred_region
          %p543 = scmp.lt.s32.totalorder %s31, 1
          %s544 = scalar_select %p543, %s31, 1
          %s545 = scalar_lea.vmem %s5, %s544
        $region40: #{tpu_custom_call.1} parent=23 // pred_fallthru
          _
        // Predicated region
        $region41: #{tpu_custom_call.1} parent=23 // pred_check
          %p546 = pneg %p211
        $region42: #{tpu_custom_call.1} parent=23 // pred_check_branch
          %548 = sbr.rel (%p546) target = $region44
        $region43: #{tpu_custom_call.1} parent=23 // pred_region
          %s549 = sand.u32 %s23, 1
          %s550 = scalar_lea.sflag [#allocation3], %s549
          %s551 = sand.u32 %s201, 1
          %s552 = scalar_lea.vmem [#allocation10], %s551
          %554 = vsyncadd %s550, 0
          %s555 = scalar_lea.hbm %s6, %s31
          %s557 = sshll.u32 %s555, 4
          %s558 = int_to_ptr.hbm [resolvable:$true] %s557
          %s559 = sshll.u32 %s552, 4
          %s560 = int_to_ptr.vmem [resolvable:$true] %s559
          %562 = dma.hbm_to_vmem [thread:$0]  %s558, 16, %s560, %s550
        $region44: #{tpu_custom_call.1} parent=23 // pred_fallthru
          _
        // Predicated region
        $region45: #{tpu_custom_call.1} parent=23 // pred_check
          %p563 = pneg %p237
        $region46: #{tpu_custom_call.1} parent=23 // pred_check_branch
          %565 = sbr.rel (%p563) target = $region48
        $region47: #{tpu_custom_call.1} parent=23 // pred_region
          %s566 = sand.u32 %s23, 1
          %s567 = scalar_lea.sflag [#allocation3], %s566
          %s568 = sand.u32 %s227, 1
          %s569 = scalar_lea.vmem [#allocation11], %s568
          %571 = vsyncadd %s567, 0
          %s572 = scalar_lea.hbm %s7, %s31
          %s574 = sshll.u32 %s572, 4
          %s575 = int_to_ptr.hbm [resolvable:$true] %s574
          %s576 = sshll.u32 %s569, 4
          %s577 = int_to_ptr.vmem [resolvable:$true] %s576
          %579 = dma.hbm_to_vmem [thread:$0]  %s575, 16, %s577, %s567
        $region48: #{tpu_custom_call.1} parent=23 // pred_fallthru
          _
        // Predicated region
        $region49: #{tpu_custom_call.1} parent=23 // pred_check
          %p580 = pneg %p263
        $region50: #{tpu_custom_call.1} parent=23 // pred_check_branch
          %582 = sbr.rel (%p580) target = $region52
        $region51: #{tpu_custom_call.1} parent=23 // pred_region
          %s583 = sand.u32 %s23, 1
          %s584 = scalar_lea.sflag [#allocation3], %s583
          %s585 = sand.u32 %s253, 1
          %s586 = smul.addr %s585, 128
          %s587 = scalar_lea.vmem [#allocation12], %s586
          %589 = vsyncadd %s584, 0
          %s590 = smul.addr %s31, 32
          %s591 = smul.addr %s590, 4
          %s592 = scalar_lea.hbm %s8, %s591
          %s593 = sshll.u32 %s592, 4
          %s594 = int_to_ptr.hbm [resolvable:$true] %s593
          %s595 = sshll.u32 %s587, 4
          %s596 = int_to_ptr.vmem [resolvable:$true] %s595
          %601 = dma.hbm_to_vmem [thread:$0]  %s594, 2048, %s596, %s584, 128, 128, 8
        $region52: #{tpu_custom_call.1} parent=23 // pred_fallthru
          _
        // Predicated region
        $region53: #{tpu_custom_call.1} parent=23 // pred_check
          %p602 = pneg %p289
        $region54: #{tpu_custom_call.1} parent=23 // pred_check_branch
          %604 = sbr.rel (%p602) target = $region56
        $region55: #{tpu_custom_call.1} parent=23 // pred_region
          %p605 = scmp.lt.s32.totalorder %s31, 1
          %s606 = scalar_select %p605, %s31, 1
          %s607 = smul.addr %s606, 2
          %s608 = scalar_lea.vmem %s9, %s607
        $region56: #{tpu_custom_call.1} parent=23 // pred_fallthru
          _
        // Predicated region
        $region57: #{tpu_custom_call.1} parent=23 // pred_check
          %p609 = pneg %p315
        $region58: #{tpu_custom_call.1} parent=23 // pred_check_branch
          %611 = sbr.rel (%p609) target = $region60
        $region59: #{tpu_custom_call.1} parent=23 // pred_region
          %s612 = sand.u32 %s23, 1
          %s613 = scalar_lea.sflag [#allocation3], %s612
          %s614 = sand.u32 %s305, 1
          %s615 = smul.addr %s614, 128
          %s616 = scalar_lea.vmem [#allocation13], %s615
          %618 = vsyncadd %s613, 0
          %s619 = smul.addr %s31, 32
          %s620 = smul.addr %s619, 4
          %s621 = scalar_lea.hbm %s10, %s620
          %s622 = sshll.u32 %s621, 4
          %s623 = int_to_ptr.hbm [resolvable:$true] %s622
          %s624 = sshll.u32 %s616, 4
          %s625 = int_to_ptr.vmem [resolvable:$true] %s624
          %630 = dma.hbm_to_vmem [thread:$0]  %s623, 2048, %s625, %s613, 64, 64, 4
        $region60: #{tpu_custom_call.1} parent=23 // pred_fallthru
          _
        // Predicated region
        $region61: #{tpu_custom_call.1} parent=23 // pred_check
          %p631 = pneg %p341
        $region62: #{tpu_custom_call.1} parent=23 // pred_check_branch
          %633 = sbr.rel (%p631) target = $region64
        $region63: #{tpu_custom_call.1} parent=23 // pred_region
          %p634 = scmp.lt.s32.totalorder %s31, 1
          %s635 = scalar_select %p634, %s31, 1
          %s636 = scalar_lea.vmem %s11, %s635
        $region64: #{tpu_custom_call.1} parent=23 // pred_fallthru
          _
        // Predicated region
        $region65: #{tpu_custom_call.1} parent=23 // pred_check
          %p637 = pneg %p367
        $region66: #{tpu_custom_call.1} parent=23 // pred_check_branch
          %639 = sbr.rel (%p637) target = $region68
        $region67: #{tpu_custom_call.1} parent=23 // pred_region
          %p640 = scmp.lt.s32.totalorder %s31, 1
          %s641 = scalar_select %p640, %s31, 1
          %s642 = scalar_lea.vmem %s12, %s641
        $region68: #{tpu_custom_call.1} parent=23 // pred_fallthru
          _
        // Predicated region
        $region69: #{tpu_custom_call.1} parent=23 // pred_check
          %p643 = pneg %p393
        $region70: #{tpu_custom_call.1} parent=23 // pred_check_branch
          %645 = sbr.rel (%p643) target = $region72
        $region71: #{tpu_custom_call.1} parent=23 // pred_region
          %p646 = scmp.lt.s32.totalorder %s31, 1
          %s647 = scalar_select %p646, %s31, 1
          %s648 = scalar_lea.vmem %s13, %s647
        $region72: #{tpu_custom_call.1} parent=23 // pred_fallthru
          _
      $region24: #{tpu_custom_call.1} parent=5 // pred_fallthru
        _
      %p649 = scmp.le.s32.totalorder 1, %s23
      %p650 = scmp.lt.s32.totalorder %s23, 3
      %p651 = pnand %p649, %p650
      %p652 = pneg %p651
      // Predicated region
      $region73: #{tpu_custom_call.1} parent=5 // pred_check
        _
      $region74: #{tpu_custom_call.1} parent=5 // pred_check_branch
        %654 = sbr.rel (%p651) target = $region76
      $region75: #{tpu_custom_call.1} parent=5 // pred_region
        %s655 = ssub.s32 %s23, 1
        // Predicated region
        $region77: #{tpu_custom_call.1} parent=75 // pred_check
          %p656 = pneg %p61
        $region78: #{tpu_custom_call.1} parent=75 // pred_check_branch
          %658 = sbr.rel (%p656) target = $region80
        $region79: #{tpu_custom_call.1} parent=75 // pred_region
          %660 = dma.done [#allocation3], 256
        $region80: #{tpu_custom_call.1} parent=75 // pred_fallthru
          _
        // Predicated region
        $region81: #{tpu_custom_call.1} parent=75 // pred_check
          %p661 = pneg %p87
        $region82: #{tpu_custom_call.1} parent=75 // pred_check_branch
          %663 = sbr.rel (%p661) target = $region84
        $region83: #{tpu_custom_call.1} parent=75 // pred_region
          %665 = dma.done [#allocation6], 32
        $region84: #{tpu_custom_call.1} parent=75 // pred_fallthru
          _
        %s666 = sand.u32 %s28, 1
        %s667 = scalar_lea.sflag [#allocation3], %s666
        %s668 = sand.u32 %s100, 1
        %s669 = smul.addr %s668, 192
        %s670 = scalar_lea.vmem [#allocation7], %s669
        // Predicated region
        $region85: #{tpu_custom_call.1} parent=75 // pred_check
          %p671 = pneg %p113
        $region86: #{tpu_custom_call.1} parent=75 // pred_check_branch
          %673 = sbr.rel (%p671) target = $region88
        $region87: #{tpu_custom_call.1} parent=75 // pred_region
          %675 = dma.done %s667, 3072
        $region88: #{tpu_custom_call.1} parent=75 // pred_fallthru
          _
        %s676 = sand.u32 %s28, 1
        %s677 = scalar_lea.sflag [#allocation3], %s676
        %s678 = sand.u32 %s126, 1
        %s679 = smul.addr %s678, 3
        %s680 = scalar_lea.vmem [#allocation8], %s679
        // Predicated region
        $region89: #{tpu_custom_call.1} parent=75 // pred_check
          %p681 = pneg %p139
        $region90: #{tpu_custom_call.1} parent=75 // pred_check_branch
          %683 = sbr.rel (%p681) target = $region92
        $region91: #{tpu_custom_call.1} parent=75 // pred_region
          %685 = dma.done %s677, 48
        $region92: #{tpu_custom_call.1} parent=75 // pred_fallthru
          _
        %s686 = sand.u32 %s28, 1
        %s687 = scalar_lea.sflag [#allocation3], %s686
        %s688 = sand.u32 %s152, 1
        %s689 = smul.addr %s688, 64
        %s690 = scalar_lea.vmem [#allocation9], %s689
        // Predicated region
        $region93: #{tpu_custom_call.1} parent=75 // pred_check
          %p691 = pneg %p165
        $region94: #{tpu_custom_call.1} parent=75 // pred_check_branch
          %693 = sbr.rel (%p691) target = $region96
        $region95: #{tpu_custom_call.1} parent=75 // pred_region
          %695 = dma.done %s687, 1024
        $region96: #{tpu_custom_call.1} parent=75 // pred_fallthru
          _
        %s696 = sand.u32 %s28, 1
        %s697 = scalar_lea.sflag [#allocation3], %s696
        %s698 = sand.u32 %s204, 1
        %s699 = scalar_lea.vmem [#allocation10], %s698
        // Predicated region
        $region97: #{tpu_custom_call.1} parent=75 // pred_check
          %p700 = pneg %p217
        $region98: #{tpu_custom_call.1} parent=75 // pred_check_branch
          %702 = sbr.rel (%p700) target = $region100
        $region99: #{tpu_custom_call.1} parent=75 // pred_region
          %704 = dma.done %s697, 16
        $region100: #{tpu_custom_call.1} parent=75 // pred_fallthru
          _
        %s705 = sand.u32 %s28, 1
        %s706 = scalar_lea.sflag [#allocation3], %s705
        %s707 = sand.u32 %s230, 1
        %s708 = scalar_lea.vmem [#allocation11], %s707
        // Predicated region
        $region101: #{tpu_custom_call.1} parent=75 // pred_check
          %p709 = pneg %p243
        $region102: #{tpu_custom_call.1} parent=75 // pred_check_branch
          %711 = sbr.rel (%p709) target = $region104
        $region103: #{tpu_custom_call.1} parent=75 // pred_region
          %713 = dma.done %s706, 16
        $region104: #{tpu_custom_call.1} parent=75 // pred_fallthru
          _
        %s714 = sand.u32 %s28, 1
        %s715 = scalar_lea.sflag [#allocation3], %s714
        %s716 = sand.u32 %s256, 1
        %s717 = smul.addr %s716, 128
        %s718 = scalar_lea.vmem [#allocation12], %s717
        // Predicated region
        $region105: #{tpu_custom_call.1} parent=75 // pred_check
          %p719 = pneg %p269
        $region106: #{tpu_custom_call.1} parent=75 // pred_check_branch
          %721 = sbr.rel (%p719) target = $region108
        $region107: #{tpu_custom_call.1} parent=75 // pred_region
          %723 = dma.done %s715, 2048
        $region108: #{tpu_custom_call.1} parent=75 // pred_fallthru
          _
        %s724 = sand.u32 %s28, 1
        %s725 = scalar_lea.sflag [#allocation3], %s724
        %s726 = sand.u32 %s308, 1
        %s727 = smul.addr %s726, 128
        %s728 = scalar_lea.vmem [#allocation13], %s727
        // Predicated region
        $region109: #{tpu_custom_call.1} parent=75 // pred_check
          %p729 = pneg %p321
        $region110: #{tpu_custom_call.1} parent=75 // pred_check_branch
          %731 = sbr.rel (%p729) target = $region112
        $region111: #{tpu_custom_call.1} parent=75 // pred_region
          %733 = dma.done %s725, 2048
        $region112: #{tpu_custom_call.1} parent=75 // pred_fallthru
          _
        %p734 = pneg %p61
        %p735 = pneg %p58
        %p736 = pneg %p87
        %p737 = pneg %p84
        %s738 = sand.u32 %s28, 1
        %s739 = scalar_lea.sflag [#allocation3], %s738
        %s740 = sand.u32 %s100, 1
        %s741 = smul.addr %s740, 192
        %s742 = scalar_lea.vmem [#allocation7], %s741
        %p743 = pneg %p113
        %p744 = pneg %p110
        %s745 = sand.u32 %s28, 1
        %s746 = scalar_lea.sflag [#allocation3], %s745
        %s747 = sand.u32 %s126, 1
        %s748 = smul.addr %s747, 3
        %s749 = scalar_lea.vmem [#allocation8], %s748
        %p750 = pneg %p139
        %p751 = pneg %p136
        %s752 = sand.u32 %s28, 1
        %s753 = scalar_lea.sflag [#allocation3], %s752
        %s754 = sand.u32 %s152, 1
        %s755 = smul.addr %s754, 64
        %s756 = scalar_lea.vmem [#allocation9], %s755
        %p757 = pneg %p165
        %p758 = pneg %p162
        %p759 = scmp.lt.s32.totalorder %s33, 1
        %s760 = scalar_select %p759, %s33, 1
        %s761 = scalar_lea.vmem %s5, %s760
        %p762 = pneg %p191
        %p763 = pneg %p188
        %s764 = sand.u32 %s28, 1
        %s765 = scalar_lea.sflag [#allocation3], %s764
        %s766 = sand.u32 %s204, 1
        %s767 = scalar_lea.vmem [#allocation10], %s766
        %p768 = pneg %p217
        %p769 = pneg %p214
        %s770 = sand.u32 %s28, 1
        %s771 = scalar_lea.sflag [#allocation3], %s770
        %s772 = sand.u32 %s230, 1
        %s773 = scalar_lea.vmem [#allocation11], %s772
        %p774 = pneg %p243
        %p775 = pneg %p240
        %s776 = sand.u32 %s28, 1
        %s777 = scalar_lea.sflag [#allocation3], %s776
        %s778 = sand.u32 %s256, 1
        %s779 = smul.addr %s778, 128
        %s780 = scalar_lea.vmem [#allocation12], %s779
        %p781 = pneg %p269
        %p782 = pneg %p266
        %p783 = scmp.lt.s32.totalorder %s33, 1
        %s784 = scalar_select %p783, %s33, 1
        %s785 = smul.addr %s784, 2
        %s786 = scalar_lea.vmem %s9, %s785
        %p787 = pneg %p295
        %p788 = pneg %p292
        %s789 = sand.u32 %s28, 1
        %s790 = scalar_lea.sflag [#allocation3], %s789
        %s791 = sand.u32 %s308, 1
        %s792 = smul.addr %s791, 128
        %s793 = scalar_lea.vmem [#allocation13], %s792
        %p794 = pneg %p321
        %p795 = pneg %p318
        %p796 = scmp.lt.s32.totalorder %s33, 1
        %s797 = scalar_select %p796, %s33, 1
        %s798 = scalar_lea.vmem %s11, %s797
        %p799 = pneg %p347
        %p800 = pneg %p344
        %p801 = scmp.lt.s32.totalorder %s33, 1
        %s802 = scalar_select %p801, %s33, 1
        %s803 = scalar_lea.vmem %s12, %s802
        %p804 = pneg %p373
        %p805 = pneg %p370
        %p806 = scmp.lt.s32.totalorder %s33, 1
        %s807 = scalar_select %p806, %s33, 1
        %s808 = scalar_lea.vmem %s13, %s807
        %p809 = pneg %p399
        %p810 = pneg %p396
        %p811 = pneg %p425
        %p812 = pneg %p422
        %s813 = smul.u32 2, %s32
        %s814 = smul.u32 2, %s32
        %p815 = scmp.lt.s32.totalorder %s33, 1
        %s816 = scalar_select %p815, %s33, 1
        %s817 = scalar_lea.vmem %s5, %s816
        %p818 = scmp.lt.s32.totalorder %s33, 1
        %s819 = scalar_select %p818, %s33, 1
        %s820 = smul.addr %s819, 2
        %s821 = scalar_lea.vmem %s9, %s820
        %p822 = scmp.lt.s32.totalorder %s33, 1
        %s823 = scalar_select %p822, %s33, 1
        %s824 = scalar_lea.vmem %s11, %s823
        %p825 = scmp.lt.s32.totalorder %s33, 1
        %s826 = scalar_select %p825, %s33, 1
        %s827 = scalar_lea.vmem %s12, %s826
        %p828 = scmp.lt.s32.totalorder %s33, 1
        %s829 = scalar_select %p828, %s33, 1
        %s830 = scalar_lea.vmem %s13, %s829
        %s831 = smul.u32 2, %s32
        %p833 = scmp.eq.s32.totalorder %s33, 0
        // Predicated region
        $region113: #{tpu_custom_call.1} parent=75 // pred_check
          %p834 = pneg %p833
        $region114: #{tpu_custom_call.1} parent=75 // pred_check_branch
          %836 = sbr.rel (%p834) target = $region116
        $region115: #{tpu_custom_call.1} parent=75 // pred_region
          %v837 = vld [vmem:[#allocation2] sm:$0xff]
          %v838 = vld [vmem:[#allocation2 + $0x8] sm:$0xff]
          %839 = vst [vmem:[#allocation14] sm:$0xff] %v837
          %840 = vst [vmem:[#allocation14 + $0x8] sm:$0xff] %v838
        $region116: #{tpu_custom_call.1} parent=75 // pred_fallthru
          _
        %v841 = vld [vmem:[#allocation14] sm:$0xff]
        %v842 = vld [vmem:[#allocation14 + $0x8] sm:$0xff]
        %v843 = vpack.c.bf16 %v842, %v841
        %v844 = vld [vmem:[%s670] sm:$0xff]
        %v845 = vld [vmem:[%s670 + $0x8] sm:$0xf]
        %v846 = vld [vmem:[%s670 + $0xc] sm:$0xff]
        %v847 = vld [vmem:[%s670 + $0x14] sm:$0xf]
        %v848 = vld [vmem:[%s670 + $0x18] sm:$0xff]
        %v849 = vld [vmem:[%s670 + $0x20] sm:$0xf]
        %v850 = vld [vmem:[%s670 + $0x24] sm:$0xff]
        %v851 = vld [vmem:[%s670 + $0x2c] sm:$0xf]
        %v852 = vld [vmem:[%s670 + $0x30] sm:$0xff]
        %v853 = vld [vmem:[%s670 + $0x38] sm:$0xf]
        %v854 = vld [vmem:[%s670 + $0x3c] sm:$0xff]
        %v855 = vld [vmem:[%s670 + $0x44] sm:$0xf]
        %v856 = vld [vmem:[%s670 + $0x48] sm:$0xff]
        %v857 = vld [vmem:[%s670 + $0x50] sm:$0xf]
        %v858 = vld [vmem:[%s670 + $0x54] sm:$0xff]
        %v859 = vld [vmem:[%s670 + $0x5c] sm:$0xf]
        %v860 = vld [vmem:[%s670 + $0x60] sm:$0xff]
        %v861 = vld [vmem:[%s670 + $0x68] sm:$0xf]
        %v862 = vld [vmem:[%s670 + $0x6c] sm:$0xff]
        %v863 = vld [vmem:[%s670 + $0x74] sm:$0xf]
        %v864 = vld [vmem:[%s670 + $0x78] sm:$0xff]
        %v865 = vld [vmem:[%s670 + $0x80] sm:$0xf]
        %v866 = vld [vmem:[%s670 + $0x84] sm:$0xff]
        %v867 = vld [vmem:[%s670 + $0x8c] sm:$0xf]
        %v868 = vld [vmem:[%s670 + $0x90] sm:$0xff]
        %v869 = vld [vmem:[%s670 + $0x98] sm:$0xf]
        %v870 = vld [vmem:[%s670 + $0x9c] sm:$0xff]
        %v871 = vld [vmem:[%s670 + $0xa4] sm:$0xf]
        %v872 = vld [vmem:[%s670 + $0xa8] sm:$0xff]
        %v873 = vld [vmem:[%s670 + $0xb0] sm:$0xf]
        %v874 = vld [vmem:[%s670 + $0xb4] sm:$0xff]
        %v875 = vld [vmem:[%s670 + $0xbc] sm:$0xf]
        %v876 = vld [vmem:[%s680] sm:$0x7]
        %v878 = vperm.slane %v876, 0
        %v879 = vperm.slane %v876, 1
        %v880 = vperm.slane %v876, 2
        %v916 = vunpack.c.l.b16 %v844
        %v917 = vunpack.c.h.b16 %v844
        %v918 = vunpack.c.l.b16 %v845
        %v919 = vunpack.c.l.b16 %v846
        %v920 = vunpack.c.h.b16 %v846
        %v921 = vunpack.c.l.b16 %v847
        %v922 = vunpack.c.l.b16 %v848
        %v923 = vunpack.c.h.b16 %v848
        %v924 = vunpack.c.l.b16 %v849
        %v925 = vunpack.c.l.b16 %v850
        %v926 = vunpack.c.h.b16 %v850
        %v927 = vunpack.c.l.b16 %v851
        %v928 = vunpack.c.l.b16 %v852
        %v929 = vunpack.c.h.b16 %v852
        %v930 = vunpack.c.l.b16 %v853
        %v931 = vunpack.c.l.b16 %v854
        %v932 = vunpack.c.h.b16 %v854
        %v933 = vunpack.c.l.b16 %v855
        %v934 = vunpack.c.l.b16 %v856
        %v935 = vunpack.c.h.b16 %v856
        %v936 = vunpack.c.l.b16 %v857
        %v937 = vunpack.c.l.b16 %v858
        %v938 = vunpack.c.h.b16 %v858
        %v939 = vunpack.c.l.b16 %v859
        %v940 = vunpack.c.l.b16 %v860
        %v941 = vunpack.c.h.b16 %v860
        %v942 = vunpack.c.l.b16 %v861
        %v943 = vunpack.c.l.b16 %v862
        %v944 = vunpack.c.h.b16 %v862
        %v945 = vunpack.c.l.b16 %v863
        %v946 = vunpack.c.l.b16 %v864
        %v947 = vunpack.c.h.b16 %v864
        %v948 = vunpack.c.l.b16 %v865
        %v949 = vunpack.c.l.b16 %v866
        %v950 = vunpack.c.h.b16 %v866
        %v951 = vunpack.c.l.b16 %v867
        %v952 = vunpack.c.l.b16 %v868
        %v953 = vunpack.c.h.b16 %v868
        %v954 = vunpack.c.l.b16 %v869
        %v955 = vunpack.c.l.b16 %v870
        %v956 = vunpack.c.h.b16 %v870
        %v957 = vunpack.c.l.b16 %v871
        %v958 = vunpack.c.l.b16 %v872
        %v959 = vunpack.c.h.b16 %v872
        %v960 = vunpack.c.l.b16 %v873
        %v961 = vunpack.c.l.b16 %v874
        %v962 = vunpack.c.h.b16 %v874
        %v963 = vunpack.c.l.b16 %v875
        %v964 = vpack.c.b16 %v919, %v916
        %v965 = vpack.c.b16 %v920, %v917
        %v966 = vpack.c.b16 %v921, %v918
        %v967 = vpack.c.b16 %v925, %v922
        %v968 = vpack.c.b16 %v926, %v923
        %v969 = vpack.c.b16 %v927, %v924
        %v970 = vpack.c.b16 %v931, %v928
        %v971 = vpack.c.b16 %v932, %v929
        %v972 = vpack.c.b16 %v933, %v930
        %v973 = vpack.c.b16 %v937, %v934
        %v974 = vpack.c.b16 %v938, %v935
        %v975 = vpack.c.b16 %v939, %v936
        %v976 = vpack.c.b16 %v943, %v940
        %v977 = vpack.c.b16 %v944, %v941
        %v978 = vpack.c.b16 %v945, %v942
        %v979 = vpack.c.b16 %v949, %v946
        %v980 = vpack.c.b16 %v950, %v947
        %v981 = vpack.c.b16 %v951, %v948
        %v982 = vpack.c.b16 %v955, %v952
        %v983 = vpack.c.b16 %v956, %v953
        %v984 = vpack.c.b16 %v957, %v954
        %v985 = vpack.c.b16 %v961, %v958
        %v986 = vpack.c.b16 %v962, %v959
        %v987 = vpack.c.b16 %v963, %v960
        %1012 = vmatpush.bf16.msra.mxu0 %v985
        %1013 = vmatpush.bf16.msra.mxu0 %v982
        %1014 = vmatpush.bf16.msra.mxu0 %v979
        %1015 = vmatpush.bf16.msra.mxu0 %v976
        %1016 = vmatpush.bf16.msra.mxu0 %v973
        %1017 = vmatpush.bf16.msra.mxu0 %v970
        %1018 = vmatpush.bf16.msra.mxu0 %v967
        %1019 = vmatpush.bf16.msra.mxu0 %v964
        %1020 = vmatmul.bf16.gmra.mxu0 %v843
        %v1021 = vpop.f32.mrf.mxu0
        %v1022 = vadd.f32 %v878, %v1021
        %v1023 = vpop.f32.mrf.mxu0
        %v1024 = vadd.f32 %v878, %v1023
        %1025 = vdwg.mxu0
        %1026 = vmatpush.bf16.msra.mxu0 %v986
        %1027 = vmatpush.bf16.msra.mxu0 %v983
        %1028 = vmatpush.bf16.msra.mxu0 %v980
        %1029 = vmatpush.bf16.msra.mxu0 %v977
        %1030 = vmatpush.bf16.msra.mxu0 %v974
        %1031 = vmatpush.bf16.msra.mxu0 %v971
        %1032 = vmatpush.bf16.msra.mxu0 %v968
        %1033 = vmatpush.bf16.msra.mxu0 %v965
        %1034 = vmatmul.bf16.gmra.mxu0 %v843
        %v1035 = vpop.f32.mrf.mxu0
        %v1036 = vadd.f32 %v879, %v1035
        %v1037 = vpop.f32.mrf.mxu0
        %v1038 = vadd.f32 %v879, %v1037
        %1039 = vdwg.mxu0
        %1040 = vmatpush.bf16.msra.mxu0 %v987
        %1041 = vmatpush.bf16.msra.mxu0 %v984
        %1042 = vmatpush.bf16.msra.mxu0 %v981
        %1043 = vmatpush.bf16.msra.mxu0 %v978
        %1044 = vmatpush.bf16.msra.mxu0 %v975
        %1045 = vmatpush.bf16.msra.mxu0 %v972
        %1046 = vmatpush.bf16.msra.mxu0 %v969
        %1047 = vmatpush.bf16.msra.mxu0 %v966
        %1048 = vmatmul.bf16.gmra.mxu0 %v843
        %v1049 = vpop.f32.mrf.mxu0
        %v1050 = vadd.f32 %v880, %v1049
        %v1051 = vpop.f32.mrf.mxu0
        %v1052 = vadd.f32 %v880, %v1051
        %1053 = vdwg.mxu0
        %v1054 = vpack.c.bf16 %v1036, %v1022
        %v1055 = vpack.c.bf16 %v1050, %v1050
        %v1056 = vpack.c.bf16 %v1038, %v1024
        %v1057 = vpack.c.bf16 %v1052, %v1052
        %v1060 = vrot.slane %v1054, 4
        %v1061 = vrot.slane %v1056, 4
        %v1062 = vld [vmem:[#allocation5] sm:$0x1]
        %v1063 = vld [vmem:[#allocation5 + $0x1] sm:$0x1]
        %v1066 = vperm.slane %v1062, 0
        %v1067 = vperm.slane %v1063, 0
        %vm1070 = vcmask 261120
        %v1072 = vsel %vm1070, %v1054, 0
        %v1075 = vsel %vm1070, %v1060, 0
        %1077 = vmatpush.bf16.xpose.msra.mxu0 0
        %1078 = vmatpush.bf16.xpose.msra.mxu0 0
        %1079 = vmatpush.bf16.xpose.msra.mxu0 0
        %1080 = vmatpush.bf16.xpose.msra.mxu0 0
        %1081 = vmatpush.bf16.xpose.msra.mxu0 0
        %1082 = vmatpush.bf16.xpose.msra.mxu0 0
        %1083 = vmatpush.bf16.xpose.msra.mxu0 0
        %1084 = vmatpush.bf16.xpose.msra.mxu0 %v1075
        %1085 = vmatmul.bf16.gmra.mxu0 %v1072
        %v1086 = vpop.f32.mrf.mxu0
        %v1087 = vadd.f32 %v1066, %v1086
        %v1088 = vpop.f32.mrf.mxu0
        %1089 = vdwg.mxu0
        %v1091 = vsel %vm1070, %v1056, 0
        %v1094 = vsel %vm1070, %v1061, 0
        %1096 = vmatpush.bf16.xpose.msra.mxu0 0
        %1097 = vmatpush.bf16.xpose.msra.mxu0 0
        %1098 = vmatpush.bf16.xpose.msra.mxu0 0
        %1099 = vmatpush.bf16.xpose.msra.mxu0 0
        %1100 = vmatpush.bf16.xpose.msra.mxu0 0
        %1101 = vmatpush.bf16.xpose.msra.mxu0 0
        %1102 = vmatpush.bf16.xpose.msra.mxu0 0
        %1103 = vmatpush.bf16.xpose.msra.mxu0 %v1094
        %1104 = vmatmul.bf16.gmra.mxu0 %v1091
        %v1105 = vpop.f32.mrf.mxu0
        %v1106 = vadd.f32 %v1067, %v1105
        %v1107 = vpop.f32.mrf.mxu0
        %1108 = vdwg.mxu0
        %vm1109 = vcmask 64512
        %v1110 = vsel %vm1109, %v1087, -inf
        %1111 = vmax.xlane.f32.xlu0 %v1110
        %v1112 = vpop.xlane.xlu0 %1111
        %v1113 = vsel %vm1109, %v1106, -inf
        %1114 = vmax.xlane.f32.xlu0 %v1113
        %v1115 = vpop.xlane.xlu0 %1114
        %v1116 = vsub.f32 %v1087, %v1112
        %v1117 = vsub.f32 %v1106, %v1115
        %v1118 = vmul.f32 %v1116, 1.442695
        %v1119 = vpow.pop %v1118
        %v1120 = vmul.f32 %v1117, 1.442695
        %v1121 = vpow.pop %v1120
        %v1122 = vsel %vm1109, %v1119, 0.0
        %1123 = vadd.xlane.f32.xlu0 %v1122
        %v1124 = vpop.xlane.xlu0 %1123
        %v1125 = vsel %vm1109, %v1121, 0.0
        %1126 = vadd.xlane.f32.xlu0 %v1125
        %v1127 = vpop.xlane.xlu0 %1126
        %v1128 = vrcp.pop %v1124
        %v1129 = vrcp.pop %v1127
        %v1130 = vmul.f32 %v1119, %v1128
        %v1131 = vmul.f32 %v1121, %v1129
        %v1132 = vpack.c.bf16 %v1130, %v1130
        %v1133 = vpack.c.bf16 %v1131, %v1131
        %v1135 = vsel %vm1109, %v1132, 0
        %vm1137 = vcmask 1043456
        %v1139 = vsel %vm1137, %v1055, 0
        %1141 = vmatpush.bf16.msra.mxu0 0
        %1142 = vmatpush.bf16.msra.mxu0 0
        %1143 = vmatpush.bf16.msra.mxu0 0
        %1144 = vmatpush.bf16.msra.mxu0 0
        %1145 = vmatpush.bf16.msra.mxu0 0
        %1146 = vmatpush.bf16.msra.mxu0 0
        %1147 = vmatpush.bf16.msra.mxu0 0
        %1148 = vmatpush.bf16.msra.mxu0 %v1139
        %1149 = vmatmul.bf16.gmra.mxu0 %v1135
        %v1150 = vpop.f32.mrf.mxu0
        %v1151 = vadd.f32 0.0, %v1150
        %v1152 = vpop.f32.mrf.mxu0
        %1153 = vdwg.mxu0
        %v1155 = vsel %vm1109, %v1133, 0
        %v1158 = vsel %vm1137, %v1057, 0
        %1160 = vmatpush.bf16.msra.mxu0 0
        %1161 = vmatpush.bf16.msra.mxu0 0
        %1162 = vmatpush.bf16.msra.mxu0 0
        %1163 = vmatpush.bf16.msra.mxu0 0
        %1164 = vmatpush.bf16.msra.mxu0 0
        %1165 = vmatpush.bf16.msra.mxu0 0
        %1166 = vmatpush.bf16.msra.mxu0 0
        %1167 = vmatpush.bf16.msra.mxu0 %v1158
        %1168 = vmatmul.bf16.gmra.mxu0 %v1155
        %v1169 = vpop.f32.mrf.mxu0
        %v1170 = vadd.f32 0.0, %v1169
        %v1171 = vpop.f32.mrf.mxu0
        %1172 = vdwg.mxu0
        %v1173 = vunpack.c.l.b16 %v1054
        %v1174 = vpack.c.b16 %v1173, %v1173
        %1175 = vrot.lane.b32.xlu0 %v1174, 96
        %v1176 = vpop.permute.xlu0 %1175
        %v1177 = vunpack.c.l.b16 %v1060
        %v1178 = vpack.c.b16 %v1177, %v1177
        %1179 = vrot.lane.b32.xlu0 %v1178, 96
        %v1180 = vpop.permute.xlu0 %1179
        %v1182 = vsel %vm1070, %v1176, 0
        %v1185 = vsel %vm1070, %v1180, 0
        %1187 = vmatpush.bf16.xpose.msra.mxu0 0
        %1188 = vmatpush.bf16.xpose.msra.mxu0 0
        %1189 = vmatpush.bf16.xpose.msra.mxu0 0
        %1190 = vmatpush.bf16.xpose.msra.mxu0 0
        %1191 = vmatpush.bf16.xpose.msra.mxu0 0
        %1192 = vmatpush.bf16.xpose.msra.mxu0 0
        %1193 = vmatpush.bf16.xpose.msra.mxu0 0
        %1194 = vmatpush.bf16.xpose.msra.mxu0 %v1185
        %1195 = vmatmul.bf16.gmra.mxu0 %v1182
        %v1196 = vpop.f32.mrf.mxu0
        %v1197 = vadd.f32 %v1066, %v1196
        %v1198 = vpop.f32.mrf.mxu0
        %1199 = vdwg.mxu0
        %v1200 = vunpack.c.l.b16 %v1056
        %v1201 = vpack.c.b16 %v1200, %v1200
        %1202 = vrot.lane.b32.xlu0 %v1201, 96
        %v1203 = vpop.permute.xlu0 %1202
        %v1204 = vunpack.c.l.b16 %v1061
        %v1205 = vpack.c.b16 %v1204, %v1204
        %1206 = vrot.lane.b32.xlu0 %v1205, 96
        %v1207 = vpop.permute.xlu0 %1206
        %v1209 = vsel %vm1070, %v1203, 0
        %v1212 = vsel %vm1070, %v1207, 0
        %1214 = vmatpush.bf16.xpose.msra.mxu0 0
        %1215 = vmatpush.bf16.xpose.msra.mxu0 0
        %1216 = vmatpush.bf16.xpose.msra.mxu0 0
        %1217 = vmatpush.bf16.xpose.msra.mxu0 0
        %1218 = vmatpush.bf16.xpose.msra.mxu0 0
        %1219 = vmatpush.bf16.xpose.msra.mxu0 0
        %1220 = vmatpush.bf16.xpose.msra.mxu0 0
        %1221 = vmatpush.bf16.xpose.msra.mxu0 %v1212
        %1222 = vmatmul.bf16.gmra.mxu0 %v1209
        %v1223 = vpop.f32.mrf.mxu0
        %v1224 = vadd.f32 %v1067, %v1223
        %v1225 = vpop.f32.mrf.mxu0
        %1226 = vdwg.mxu0
        %v1227 = vsel %vm1109, %v1197, -inf
        %1228 = vmax.xlane.f32.xlu0 %v1227
        %v1229 = vpop.xlane.xlu0 %1228
        %v1230 = vsel %vm1109, %v1224, -inf
        %1231 = vmax.xlane.f32.xlu0 %v1230
        %v1232 = vpop.xlane.xlu0 %1231
        %v1233 = vsub.f32 %v1197, %v1229
        %v1234 = vsub.f32 %v1224, %v1232
        %v1235 = vmul.f32 %v1233, 1.442695
        %v1236 = vpow.pop %v1235
        %v1237 = vmul.f32 %v1234, 1.442695
        %v1238 = vpow.pop %v1237
        %v1239 = vsel %vm1109, %v1236, 0.0
        %1240 = vadd.xlane.f32.xlu0 %v1239
        %v1241 = vpop.xlane.xlu0 %1240
        %v1242 = vsel %vm1109, %v1238, 0.0
        %1243 = vadd.xlane.f32.xlu0 %v1242
        %v1244 = vpop.xlane.xlu0 %1243
        %v1245 = vrcp.pop %v1241
        %v1246 = vrcp.pop %v1244
        %v1247 = vmul.f32 %v1236, %v1245
        %v1248 = vmul.f32 %v1238, %v1246
        %v1249 = vpack.c.bf16 %v1247, %v1247
        %v1250 = vpack.c.bf16 %v1248, %v1248
        %v1252 = vunpack.c.l.b16 %v1055
        %v1253 = vpack.c.b16 %v1252, %v1252
        %1254 = vrot.lane.b32.xlu0 %v1253, 96
        %v1255 = vpop.permute.xlu0 %1254
        %v1257 = vsel %vm1109, %v1249, 0
        %v1260 = vsel %vm1137, %v1255, 0
        %1262 = vmatpush.bf16.msra.mxu0 0
        %1263 = vmatpush.bf16.msra.mxu0 0
        %1264 = vmatpush.bf16.msra.mxu0 0
        %1265 = vmatpush.bf16.msra.mxu0 0
        %1266 = vmatpush.bf16.msra.mxu0 0
        %1267 = vmatpush.bf16.msra.mxu0 0
        %1268 = vmatpush.bf16.msra.mxu0 0
        %1269 = vmatpush.bf16.msra.mxu0 %v1260
        %1270 = vmatmul.bf16.gmra.mxu0 %v1257
        %v1271 = vpop.f32.mrf.mxu0
        %v1272 = vadd.f32 0.0, %v1271
        %v1273 = vpop.f32.mrf.mxu0
        %1274 = vdwg.mxu0
        %v1276 = vunpack.c.l.b16 %v1057
        %v1277 = vpack.c.b16 %v1276, %v1276
        %1278 = vrot.lane.b32.xlu0 %v1277, 96
        %v1279 = vpop.permute.xlu0 %1278
        %v1281 = vsel %vm1109, %v1250, 0
        %v1284 = vsel %vm1137, %v1279, 0
        %1286 = vmatpush.bf16.msra.mxu0 0
        %1287 = vmatpush.bf16.msra.mxu0 0
        %1288 = vmatpush.bf16.msra.mxu0 0
        %1289 = vmatpush.bf16.msra.mxu0 0
        %1290 = vmatpush.bf16.msra.mxu0 0
        %1291 = vmatpush.bf16.msra.mxu0 0
        %1292 = vmatpush.bf16.msra.mxu0 0
        %1293 = vmatpush.bf16.msra.mxu0 %v1284
        %1294 = vmatmul.bf16.gmra.mxu0 %v1281
        %v1295 = vpop.f32.mrf.mxu0
        %v1296 = vadd.f32 0.0, %v1295
        %v1297 = vpop.f32.mrf.mxu0
        %1298 = vdwg.mxu0
        %1299 = vrot.lane.b32.xlu0 %v1174, 64
        %v1300 = vpop.permute.xlu0 %1299
        %1301 = vrot.lane.b32.xlu0 %v1178, 64
        %v1302 = vpop.permute.xlu0 %1301
        %v1304 = vsel %vm1070, %v1300, 0
        %v1307 = vsel %vm1070, %v1302, 0
        %1309 = vmatpush.bf16.xpose.msra.mxu0 0
        %1310 = vmatpush.bf16.xpose.msra.mxu0 0
        %1311 = vmatpush.bf16.xpose.msra.mxu0 0
        %1312 = vmatpush.bf16.xpose.msra.mxu0 0
        %1313 = vmatpush.bf16.xpose.msra.mxu0 0
        %1314 = vmatpush.bf16.xpose.msra.mxu0 0
        %1315 = vmatpush.bf16.xpose.msra.mxu0 0
        %1316 = vmatpush.bf16.xpose.msra.mxu0 %v1307
        %1317 = vmatmul.bf16.gmra.mxu0 %v1304
        %v1318 = vpop.f32.mrf.mxu0
        %v1319 = vadd.f32 %v1066, %v1318
        %v1320 = vpop.f32.mrf.mxu0
        %1321 = vdwg.mxu0
        %1322 = vrot.lane.b32.xlu0 %v1201, 64
        %v1323 = vpop.permute.xlu0 %1322
        %1324 = vrot.lane.b32.xlu0 %v1205, 64
        %v1325 = vpop.permute.xlu0 %1324
        %v1327 = vsel %vm1070, %v1323, 0
        %v1330 = vsel %vm1070, %v1325, 0
        %1332 = vmatpush.bf16.xpose.msra.mxu0 0
        %1333 = vmatpush.bf16.xpose.msra.mxu0 0
        %1334 = vmatpush.bf16.xpose.msra.mxu0 0
        %1335 = vmatpush.bf16.xpose.msra.mxu0 0
        %1336 = vmatpush.bf16.xpose.msra.mxu0 0
        %1337 = vmatpush.bf16.xpose.msra.mxu0 0
        %1338 = vmatpush.bf16.xpose.msra.mxu0 0
        %1339 = vmatpush.bf16.xpose.msra.mxu0 %v1330
        %1340 = vmatmul.bf16.gmra.mxu0 %v1327
        %v1341 = vpop.f32.mrf.mxu0
        %v1342 = vadd.f32 %v1067, %v1341
        %v1343 = vpop.f32.mrf.mxu0
        %1344 = vdwg.mxu0
        %v1345 = vsel %vm1109, %v1319, -inf
        %1346 = vmax.xlane.f32.xlu0 %v1345
        %v1347 = vpop.xlane.xlu0 %1346
        %v1348 = vsel %vm1109, %v1342, -inf
        %1349 = vmax.xlane.f32.xlu0 %v1348
        %v1350 = vpop.xlane.xlu0 %1349
        %v1351 = vsub.f32 %v1319, %v1347
        %v1352 = vsub.f32 %v1342, %v1350
        %v1353 = vmul.f32 %v1351, 1.442695
        %v1354 = vpow.pop %v1353
        %v1355 = vmul.f32 %v1352, 1.442695
        %v1356 = vpow.pop %v1355
        %v1357 = vsel %vm1109, %v1354, 0.0
        %1358 = vadd.xlane.f32.xlu0 %v1357
        %v1359 = vpop.xlane.xlu0 %1358
        %v1360 = vsel %vm1109, %v1356, 0.0
        %1361 = vadd.xlane.f32.xlu0 %v1360
        %v1362 = vpop.xlane.xlu0 %1361
        %v1363 = vrcp.pop %v1359
        %v1364 = vrcp.pop %v1362
        %v1365 = vmul.f32 %v1354, %v1363
        %v1366 = vmul.f32 %v1356, %v1364
        %v1367 = vpack.c.bf16 %v1365, %v1365
        %v1368 = vpack.c.bf16 %v1366, %v1366
        %1369 = vrot.lane.b32.xlu0 %v1253, 64
        %v1370 = vpop.permute.xlu0 %1369
        %v1372 = vsel %vm1109, %v1367, 0
        %v1375 = vsel %vm1137, %v1370, 0
        %1377 = vmatpush.bf16.msra.mxu0 0
        %1378 = vmatpush.bf16.msra.mxu0 0
        %1379 = vmatpush.bf16.msra.mxu0 0
        %1380 = vmatpush.bf16.msra.mxu0 0
        %1381 = vmatpush.bf16.msra.mxu0 0
        %1382 = vmatpush.bf16.msra.mxu0 0
        %1383 = vmatpush.bf16.msra.mxu0 0
        %1384 = vmatpush.bf16.msra.mxu0 %v1375
        %1385 = vmatmul.bf16.gmra.mxu0 %v1372
        %v1386 = vpop.f32.mrf.mxu0
        %v1387 = vadd.f32 0.0, %v1386
        %v1388 = vpop.f32.mrf.mxu0
        %1389 = vdwg.mxu0
        %1390 = vrot.lane.b32.xlu0 %v1277, 64
        %v1391 = vpop.permute.xlu0 %1390
        %v1393 = vsel %vm1109, %v1368, 0
        %v1396 = vsel %vm1137, %v1391, 0
        %1398 = vmatpush.bf16.msra.mxu0 0
        %1399 = vmatpush.bf16.msra.mxu0 0
        %1400 = vmatpush.bf16.msra.mxu0 0
        %1401 = vmatpush.bf16.msra.mxu0 0
        %1402 = vmatpush.bf16.msra.mxu0 0
        %1403 = vmatpush.bf16.msra.mxu0 0
        %1404 = vmatpush.bf16.msra.mxu0 0
        %1405 = vmatpush.bf16.msra.mxu0 %v1396
        %1406 = vmatmul.bf16.gmra.mxu0 %v1393
        %v1407 = vpop.f32.mrf.mxu0
        %v1408 = vadd.f32 0.0, %v1407
        %v1409 = vpop.f32.mrf.mxu0
        %1410 = vdwg.mxu0
        %1411 = vrot.lane.b32.xlu0 %v1174, 32
        %v1412 = vpop.permute.xlu0 %1411
        %1413 = vrot.lane.b32.xlu0 %v1178, 32
        %v1414 = vpop.permute.xlu0 %1413
        %v1416 = vsel %vm1070, %v1412, 0
        %v1419 = vsel %vm1070, %v1414, 0
        %1421 = vmatpush.bf16.xpose.msra.mxu0 0
        %1422 = vmatpush.bf16.xpose.msra.mxu0 0
        %1423 = vmatpush.bf16.xpose.msra.mxu0 0
        %1424 = vmatpush.bf16.xpose.msra.mxu0 0
        %1425 = vmatpush.bf16.xpose.msra.mxu0 0
        %1426 = vmatpush.bf16.xpose.msra.mxu0 0
        %1427 = vmatpush.bf16.xpose.msra.mxu0 0
        %1428 = vmatpush.bf16.xpose.msra.mxu0 %v1419
        %1429 = vmatmul.bf16.gmra.mxu0 %v1416
        %v1430 = vpop.f32.mrf.mxu0
        %v1431 = vadd.f32 %v1066, %v1430
        %v1432 = vpop.f32.mrf.mxu0
        %1433 = vdwg.mxu0
        %1434 = vrot.lane.b32.xlu0 %v1201, 32
        %v1435 = vpop.permute.xlu0 %1434
        %1436 = vrot.lane.b32.xlu0 %v1205, 32
        %v1437 = vpop.permute.xlu0 %1436
        %v1439 = vsel %vm1070, %v1435, 0
        %v1442 = vsel %vm1070, %v1437, 0
        %1444 = vmatpush.bf16.xpose.msra.mxu0 0
        %1445 = vmatpush.bf16.xpose.msra.mxu0 0
        %1446 = vmatpush.bf16.xpose.msra.mxu0 0
        %1447 = vmatpush.bf16.xpose.msra.mxu0 0
        %1448 = vmatpush.bf16.xpose.msra.mxu0 0
        %1449 = vmatpush.bf16.xpose.msra.mxu0 0
        %1450 = vmatpush.bf16.xpose.msra.mxu0 0
        %1451 = vmatpush.bf16.xpose.msra.mxu0 %v1442
        %1452 = vmatmul.bf16.gmra.mxu0 %v1439
        %v1453 = vpop.f32.mrf.mxu0
        %v1454 = vadd.f32 %v1067, %v1453
        %v1455 = vpop.f32.mrf.mxu0
        %1456 = vdwg.mxu0
        %v1457 = vsel %vm1109, %v1431, -inf
        %1458 = vmax.xlane.f32.xlu0 %v1457
        %v1459 = vpop.xlane.xlu0 %1458
        %v1460 = vsel %vm1109, %v1454, -inf
        %1461 = vmax.xlane.f32.xlu0 %v1460
        %v1462 = vpop.xlane.xlu0 %1461
        %v1463 = vsub.f32 %v1431, %v1459
        %v1464 = vsub.f32 %v1454, %v1462
        %v1465 = vmul.f32 %v1463, 1.442695
        %v1466 = vpow.pop %v1465
        %v1467 = vmul.f32 %v1464, 1.442695
        %v1468 = vpow.pop %v1467
        %v1469 = vsel %vm1109, %v1466, 0.0
        %1470 = vadd.xlane.f32.xlu0 %v1469
        %v1471 = vpop.xlane.xlu0 %1470
        %v1472 = vsel %vm1109, %v1468, 0.0
        %1473 = vadd.xlane.f32.xlu0 %v1472
        %v1474 = vpop.xlane.xlu0 %1473
        %v1475 = vrcp.pop %v1471
        %v1476 = vrcp.pop %v1474
        %v1477 = vmul.f32 %v1466, %v1475
        %v1478 = vmul.f32 %v1468, %v1476
        %v1479 = vpack.c.bf16 %v1477, %v1477
        %v1480 = vpack.c.bf16 %v1478, %v1478
        %1481 = vrot.lane.b32.xlu0 %v1253, 32
        %v1482 = vpop.permute.xlu0 %1481
        %v1484 = vsel %vm1109, %v1479, 0
        %v1487 = vsel %vm1137, %v1482, 0
        %1489 = vmatpush.bf16.msra.mxu0 0
        %1490 = vmatpush.bf16.msra.mxu0 0
        %1491 = vmatpush.bf16.msra.mxu0 0
        %1492 = vmatpush.bf16.msra.mxu0 0
        %1493 = vmatpush.bf16.msra.mxu0 0
        %1494 = vmatpush.bf16.msra.mxu0 0
        %1495 = vmatpush.bf16.msra.mxu0 0
        %1496 = vmatpush.bf16.msra.mxu0 %v1487
        %1497 = vmatmul.bf16.gmra.mxu0 %v1484
        %v1498 = vpop.f32.mrf.mxu0
        %v1499 = vadd.f32 0.0, %v1498
        %v1500 = vpop.f32.mrf.mxu0
        %1501 = vdwg.mxu0
        %1502 = vrot.lane.b32.xlu0 %v1277, 32
        %v1503 = vpop.permute.xlu0 %1502
        %v1505 = vsel %vm1109, %v1480, 0
        %v1508 = vsel %vm1137, %v1503, 0
        %1510 = vmatpush.bf16.msra.mxu0 0
        %1511 = vmatpush.bf16.msra.mxu0 0
        %1512 = vmatpush.bf16.msra.mxu0 0
        %1513 = vmatpush.bf16.msra.mxu0 0
        %1514 = vmatpush.bf16.msra.mxu0 0
        %1515 = vmatpush.bf16.msra.mxu0 0
        %1516 = vmatpush.bf16.msra.mxu0 0
        %1517 = vmatpush.bf16.msra.mxu0 %v1508
        %1518 = vmatmul.bf16.gmra.mxu0 %v1505
        %v1519 = vpop.f32.mrf.mxu0
        %v1520 = vadd.f32 0.0, %v1519
        %v1521 = vpop.f32.mrf.mxu0
        %1522 = vdwg.mxu0
        %1525 = vrot.lane.b32.xlu0 %v1272, 32
        %v1526 = vpop.permute.xlu0 %1525
        %1527 = vrot.lane.b32.xlu0 %v1296, 32
        %v1528 = vpop.permute.xlu0 %1527
        %1533 = vrot.lane.b32.xlu0 %v1387, 64
        %v1534 = vpop.permute.xlu0 %1533
        %1535 = vrot.lane.b32.xlu0 %v1408, 64
        %v1536 = vpop.permute.xlu0 %1535
        %1541 = vrot.lane.b32.xlu0 %v1499, 96
        %v1542 = vpop.permute.xlu0 %1541
        %1543 = vrot.lane.b32.xlu0 %v1520, 96
        %v1544 = vpop.permute.xlu0 %1543
        %v1547 = vsel %vm1070, %v1151, %v1526
        %v1548 = vsel %vm1070, %v1170, %v1528
        %vm1549 = vcmask 523264
        %v1550 = vsel %vm1549, %v1547, %v1534
        %v1551 = vsel %vm1549, %v1548, %v1536
        %vm1552 = vcmask 785408
        %v1553 = vsel %vm1552, %v1550, %v1542
        %v1554 = vsel %vm1552, %v1551, %v1544
        %v1555 = vpack.c.bf16 %v1554, %v1553
        %v1556 = vld [vmem:[%s690] sm:$0xf]
        %v1557 = vld [vmem:[%s690 + $0x4] sm:$0xf]
        %v1558 = vld [vmem:[%s690 + $0x8] sm:$0xf]
        %v1559 = vld [vmem:[%s690 + $0xc] sm:$0xf]
        %v1560 = vld [vmem:[%s690 + $0x10] sm:$0xf]
        %v1561 = vld [vmem:[%s690 + $0x14] sm:$0xf]
        %v1562 = vld [vmem:[%s690 + $0x18] sm:$0xf]
        %v1563 = vld [vmem:[%s690 + $0x1c] sm:$0xf]
        %v1564 = vld [vmem:[%s690 + $0x20] sm:$0xf]
        %v1565 = vld [vmem:[%s690 + $0x24] sm:$0xf]
        %v1566 = vld [vmem:[%s690 + $0x28] sm:$0xf]
        %v1567 = vld [vmem:[%s690 + $0x2c] sm:$0xf]
        %v1568 = vld [vmem:[%s690 + $0x30] sm:$0xf]
        %v1569 = vld [vmem:[%s690 + $0x34] sm:$0xf]
        %v1570 = vld [vmem:[%s690 + $0x38] sm:$0xf]
        %v1571 = vld [vmem:[%s690 + $0x3c] sm:$0xf]
        %v1572 = vld [vmem:[%s817] sm:$0x1]
        %v1574 = vperm.slane %v1572, 0
        %v1592 = vunpack.c.l.b16 %v1556
        %v1593 = vunpack.c.l.b16 %v1557
        %v1594 = vunpack.c.l.b16 %v1558
        %v1595 = vunpack.c.l.b16 %v1559
        %v1596 = vunpack.c.l.b16 %v1560
        %v1597 = vunpack.c.l.b16 %v1561
        %v1598 = vunpack.c.l.b16 %v1562
        %v1599 = vunpack.c.l.b16 %v1563
        %v1600 = vunpack.c.l.b16 %v1564
        %v1601 = vunpack.c.l.b16 %v1565
        %v1602 = vunpack.c.l.b16 %v1566
        %v1603 = vunpack.c.l.b16 %v1567
        %v1604 = vunpack.c.l.b16 %v1568
        %v1605 = vunpack.c.l.b16 %v1569
        %v1606 = vunpack.c.l.b16 %v1570
        %v1607 = vunpack.c.l.b16 %v1571
        %v1608 = vpack.c.b16 %v1593, %v1592
        %v1609 = vpack.c.b16 %v1595, %v1594
        %v1610 = vpack.c.b16 %v1597, %v1596
        %v1611 = vpack.c.b16 %v1599, %v1598
        %v1612 = vpack.c.b16 %v1601, %v1600
        %v1613 = vpack.c.b16 %v1603, %v1602
        %v1614 = vpack.c.b16 %v1605, %v1604
        %v1615 = vpack.c.b16 %v1607, %v1606
        %1624 = vmatpush.bf16.msra.mxu0 %v1615
        %1625 = vmatpush.bf16.msra.mxu0 %v1614
        %1626 = vmatpush.bf16.msra.mxu0 %v1613
        %1627 = vmatpush.bf16.msra.mxu0 %v1612
        %1628 = vmatpush.bf16.msra.mxu0 %v1611
        %1629 = vmatpush.bf16.msra.mxu0 %v1610
        %1630 = vmatpush.bf16.msra.mxu0 %v1609
        %1631 = vmatpush.bf16.msra.mxu0 %v1608
        %1632 = vmatmul.bf16.gmra.mxu0 %v1555
        %v1633 = vpop.f32.mrf.mxu0
        %v1634 = vadd.f32 %v1574, %v1633
        %v1635 = vpop.f32.mrf.mxu0
        %v1636 = vadd.f32 %v1574, %v1635
        %1637 = vdwg.mxu0
        %v1638 = vadd.f32 %v841, %v1634
        %v1639 = vadd.f32 %v842, %v1636
        %v1640 = vld [vmem:[%s699] sm:$0x1]
        %v1641 = vld [vmem:[%s708] sm:$0x1]
        %1642 = vadd.xlane.f32.xlu0 %v1638
        %v1643 = vpop.xlane.xlu0 %1642
        %1644 = vadd.xlane.f32.xlu0 %v1639
        %v1645 = vpop.xlane.xlu0 %1644
        %v1646 = vrcp.pop 128.0
        %v1647 = vmul.f32 128.0, %v1646
        %v1648 = vsub.f32 1.0, %v1647
        %v1649 = vmul.f32 %v1646, %v1648
        %v1650 = vadd.f32 %v1646, %v1649
        %vm1651 = vweird.f32 %v1646
        %v1652 = vsel %vm1651, %v1646, %v1650
        %v1653 = vmul.f32 %v1643, %v1652
        %v1654 = vmul.f32 %v1645, %v1652
        %v1655 = vsub.f32 %v1638, %v1653
        %v1656 = vsub.f32 %v1639, %v1654
        %v1657 = vmul.f32 %v1655, %v1655
        %v1658 = vmul.f32 %v1656, %v1656
        %1659 = vadd.xlane.f32.xlu0 %v1657
        %v1660 = vpop.xlane.xlu0 %1659
        %1661 = vadd.xlane.f32.xlu0 %v1658
        %v1662 = vpop.xlane.xlu0 %1661
        %v1663 = vmul.f32 %v1660, %v1652
        %v1664 = vmul.f32 %v1662, %v1652
        %v1665 = vadd.f32 %v1663, 1e-05
        %v1666 = vadd.f32 %v1664, 1e-05
        %v1667 = vrsqrt.pop %v1665
        %v1668 = vmul.f32 %v1667, %v1665
        %v1669 = vmul.f32 %v1668, %v1667
        %v1670 = vmul.f32 0.5, %v1669
        %v1671 = vsub.f32 1.5, %v1670
        %v1672 = vmul.f32 %v1667, %v1671
        %vm1673 = vweird.f32 %v1665
        %vm1674 = vweird.f32 %v1667
        %vm1675 = vmor %vm1673, %vm1674
        %v1676 = vsel %vm1675, %v1667, %v1672
        %v1677 = vrsqrt.pop %v1666
        %v1678 = vmul.f32 %v1677, %v1666
        %v1679 = vmul.f32 %v1678, %v1677
        %v1680 = vmul.f32 0.5, %v1679
        %v1681 = vsub.f32 1.5, %v1680
        %v1682 = vmul.f32 %v1677, %v1681
        %vm1683 = vweird.f32 %v1666
        %vm1684 = vweird.f32 %v1677
        %vm1685 = vmor %vm1683, %vm1684
        %v1686 = vsel %vm1685, %v1677, %v1682
        %v1687 = vmul.f32 %v1655, %v1676
        %v1688 = vmul.f32 %v1656, %v1686
        %v1690 = vperm.slane %v1640, 0
        %v1692 = vmul.f32 %v1687, %v1690
        %v1693 = vmul.f32 %v1688, %v1690
        %v1695 = vperm.slane %v1641, 0
        %v1697 = vadd.f32 %v1692, %v1695
        %v1698 = vadd.f32 %v1693, %v1695
        %v1699 = vpack.c.bf16 %v1698, %v1697
        %v1700 = vld [vmem:[%s718] sm:$0xff]
        %v1701 = vld [vmem:[%s718 + $0x8] sm:$0xff]
        %v1702 = vld [vmem:[%s718 + $0x10] sm:$0xff]
        %v1703 = vld [vmem:[%s718 + $0x18] sm:$0xff]
        %v1704 = vld [vmem:[%s718 + $0x20] sm:$0xff]
        %v1705 = vld [vmem:[%s718 + $0x28] sm:$0xff]
        %v1706 = vld [vmem:[%s718 + $0x30] sm:$0xff]
        %v1707 = vld [vmem:[%s718 + $0x38] sm:$0xff]
        %v1708 = vld [vmem:[%s718 + $0x40] sm:$0xff]
        %v1709 = vld [vmem:[%s718 + $0x48] sm:$0xff]
        %v1710 = vld [vmem:[%s718 + $0x50] sm:$0xff]
        %v1711 = vld [vmem:[%s718 + $0x58] sm:$0xff]
        %v1712 = vld [vmem:[%s718 + $0x60] sm:$0xff]
        %v1713 = vld [vmem:[%s718 + $0x68] sm:$0xff]
        %v1714 = vld [vmem:[%s718 + $0x70] sm:$0xff]
        %v1715 = vld [vmem:[%s718 + $0x78] sm:$0xff]
        %v1716 = vld [vmem:[%s821] sm:$0x3]
        %v1718 = vperm.slane %v1716, 0
        %v1719 = vperm.slane %v1716, 1
        %v1738 = vunpack.c.l.b16 %v1700
        %v1739 = vunpack.c.h.b16 %v1700
        %v1740 = vunpack.c.l.b16 %v1701
        %v1741 = vunpack.c.h.b16 %v1701
        %v1742 = vunpack.c.l.b16 %v1702
        %v1743 = vunpack.c.h.b16 %v1702
        %v1744 = vunpack.c.l.b16 %v1703
        %v1745 = vunpack.c.h.b16 %v1703
        %v1746 = vunpack.c.l.b16 %v1704
        %v1747 = vunpack.c.h.b16 %v1704
        %v1748 = vunpack.c.l.b16 %v1705
        %v1749 = vunpack.c.h.b16 %v1705
        %v1750 = vunpack.c.l.b16 %v1706
        %v1751 = vunpack.c.h.b16 %v1706
        %v1752 = vunpack.c.l.b16 %v1707
        %v1753 = vunpack.c.h.b16 %v1707
        %v1754 = vunpack.c.l.b16 %v1708
        %v1755 = vunpack.c.h.b16 %v1708
        %v1756 = vunpack.c.l.b16 %v1709
        %v1757 = vunpack.c.h.b16 %v1709
        %v1758 = vunpack.c.l.b16 %v1710
        %v1759 = vunpack.c.h.b16 %v1710
        %v1760 = vunpack.c.l.b16 %v1711
        %v1761 = vunpack.c.h.b16 %v1711
        %v1762 = vunpack.c.l.b16 %v1712
        %v1763 = vunpack.c.h.b16 %v1712
        %v1764 = vunpack.c.l.b16 %v1713
        %v1765 = vunpack.c.h.b16 %v1713
        %v1766 = vunpack.c.l.b16 %v1714
        %v1767 = vunpack.c.h.b16 %v1714
        %v1768 = vunpack.c.l.b16 %v1715
        %v1769 = vunpack.c.h.b16 %v1715
        %v1770 = vpack.c.b16 %v1740, %v1738
        %v1771 = vpack.c.b16 %v1741, %v1739
        %v1772 = vpack.c.b16 %v1744, %v1742
        %v1773 = vpack.c.b16 %v1745, %v1743
        %v1774 = vpack.c.b16 %v1748, %v1746
        %v1775 = vpack.c.b16 %v1749, %v1747
        %v1776 = vpack.c.b16 %v1752, %v1750
        %v1777 = vpack.c.b16 %v1753, %v1751
        %v1778 = vpack.c.b16 %v1756, %v1754
        %v1779 = vpack.c.b16 %v1757, %v1755
        %v1780 = vpack.c.b16 %v1760, %v1758
        %v1781 = vpack.c.b16 %v1761, %v1759
        %v1782 = vpack.c.b16 %v1764, %v1762
        %v1783 = vpack.c.b16 %v1765, %v1763
        %v1784 = vpack.c.b16 %v1768, %v1766
        %v1785 = vpack.c.b16 %v1769, %v1767
        %1802 = vmatpush.bf16.msra.mxu0 %v1784
        %1803 = vmatpush.bf16.msra.mxu0 %v1782
        %1804 = vmatpush.bf16.msra.mxu0 %v1780
        %1805 = vmatpush.bf16.msra.mxu0 %v1778
        %1806 = vmatpush.bf16.msra.mxu0 %v1776
        %1807 = vmatpush.bf16.msra.mxu0 %v1774
        %1808 = vmatpush.bf16.msra.mxu0 %v1772
        %1809 = vmatpush.bf16.msra.mxu0 %v1770
        %1810 = vmatmul.bf16.gmra.mxu0 %v1699
        %v1811 = vpop.f32.mrf.mxu0
        %v1812 = vadd.f32 %v1718, %v1811
        %v1813 = vpop.f32.mrf.mxu0
        %v1814 = vadd.f32 %v1718, %v1813
        %1815 = vdwg.mxu0
        %1816 = vmatpush.bf16.msra.mxu0 %v1785
        %1817 = vmatpush.bf16.msra.mxu0 %v1783
        %1818 = vmatpush.bf16.msra.mxu0 %v1781
        %1819 = vmatpush.bf16.msra.mxu0 %v1779
        %1820 = vmatpush.bf16.msra.mxu0 %v1777
        %1821 = vmatpush.bf16.msra.mxu0 %v1775
        %1822 = vmatpush.bf16.msra.mxu0 %v1773
        %1823 = vmatpush.bf16.msra.mxu0 %v1771
        %1824 = vmatmul.bf16.gmra.mxu0 %v1699
        %v1825 = vpop.f32.mrf.mxu0
        %v1826 = vadd.f32 %v1719, %v1825
        %v1827 = vpop.f32.mrf.mxu0
        %v1828 = vadd.f32 %v1719, %v1827
        %1829 = vdwg.mxu0
        %v1830 = vmax.f32 %v1812, 0.0
        %v1831 = vmax.f32 %v1826, 0.0
        %v1832 = vmax.f32 %v1814, 0.0
        %v1833 = vmax.f32 %v1828, 0.0
        %v1834 = vpack.c.bf16 %v1832, %v1830
        %v1835 = vpack.c.bf16 %v1833, %v1831
        %v1836 = vld [vmem:[%s728] sm:$0xf]
        %v1837 = vld [vmem:[%s728 + $0x4] sm:$0xf]
        %v1838 = vld [vmem:[%s728 + $0x8] sm:$0xf]
        %v1839 = vld [vmem:[%s728 + $0xc] sm:$0xf]
        %v1840 = vld [vmem:[%s728 + $0x10] sm:$0xf]
        %v1841 = vld [vmem:[%s728 + $0x14] sm:$0xf]
        %v1842 = vld [vmem:[%s728 + $0x18] sm:$0xf]
        %v1843 = vld [vmem:[%s728 + $0x1c] sm:$0xf]
        %v1844 = vld [vmem:[%s728 + $0x20] sm:$0xf]
        %v1845 = vld [vmem:[%s728 + $0x24] sm:$0xf]
        %v1846 = vld [vmem:[%s728 + $0x28] sm:$0xf]
        %v1847 = vld [vmem:[%s728 + $0x2c] sm:$0xf]
        %v1848 = vld [vmem:[%s728 + $0x30] sm:$0xf]
        %v1849 = vld [vmem:[%s728 + $0x34] sm:$0xf]
        %v1850 = vld [vmem:[%s728 + $0x38] sm:$0xf]
        %v1851 = vld [vmem:[%s728 + $0x3c] sm:$0xf]
        %v1852 = vld [vmem:[%s728 + $0x40] sm:$0xf]
        %v1853 = vld [vmem:[%s728 + $0x44] sm:$0xf]
        %v1854 = vld [vmem:[%s728 + $0x48] sm:$0xf]
        %v1855 = vld [vmem:[%s728 + $0x4c] sm:$0xf]
        %v1856 = vld [vmem:[%s728 + $0x50] sm:$0xf]
        %v1857 = vld [vmem:[%s728 + $0x54] sm:$0xf]
        %v1858 = vld [vmem:[%s728 + $0x58] sm:$0xf]
        %v1859 = vld [vmem:[%s728 + $0x5c] sm:$0xf]
        %v1860 = vld [vmem:[%s728 + $0x60] sm:$0xf]
        %v1861 = vld [vmem:[%s728 + $0x64] sm:$0xf]
        %v1862 = vld [vmem:[%s728 + $0x68] sm:$0xf]
        %v1863 = vld [vmem:[%s728 + $0x6c] sm:$0xf]
        %v1864 = vld [vmem:[%s728 + $0x70] sm:$0xf]
        %v1865 = vld [vmem:[%s728 + $0x74] sm:$0xf]
        %v1866 = vld [vmem:[%s728 + $0x78] sm:$0xf]
        %v1867 = vld [vmem:[%s728 + $0x7c] sm:$0xf]
        %v1868 = vld [vmem:[%s824] sm:$0x1]
        %v1870 = vperm.slane %v1868, 0
        %v1904 = vunpack.c.l.b16 %v1836
        %v1905 = vunpack.c.l.b16 %v1837
        %v1906 = vunpack.c.l.b16 %v1838
        %v1907 = vunpack.c.l.b16 %v1839
        %v1908 = vunpack.c.l.b16 %v1840
        %v1909 = vunpack.c.l.b16 %v1841
        %v1910 = vunpack.c.l.b16 %v1842
        %v1911 = vunpack.c.l.b16 %v1843
        %v1912 = vunpack.c.l.b16 %v1844
        %v1913 = vunpack.c.l.b16 %v1845
        %v1914 = vunpack.c.l.b16 %v1846
        %v1915 = vunpack.c.l.b16 %v1847
        %v1916 = vunpack.c.l.b16 %v1848
        %v1917 = vunpack.c.l.b16 %v1849
        %v1918 = vunpack.c.l.b16 %v1850
        %v1919 = vunpack.c.l.b16 %v1851
        %v1920 = vunpack.c.l.b16 %v1852
        %v1921 = vunpack.c.l.b16 %v1853
        %v1922 = vunpack.c.l.b16 %v1854
        %v1923 = vunpack.c.l.b16 %v1855
        %v1924 = vunpack.c.l.b16 %v1856
        %v1925 = vunpack.c.l.b16 %v1857
        %v1926 = vunpack.c.l.b16 %v1858
        %v1927 = vunpack.c.l.b16 %v1859
        %v1928 = vunpack.c.l.b16 %v1860
        %v1929 = vunpack.c.l.b16 %v1861
        %v1930 = vunpack.c.l.b16 %v1862
        %v1931 = vunpack.c.l.b16 %v1863
        %v1932 = vunpack.c.l.b16 %v1864
        %v1933 = vunpack.c.l.b16 %v1865
        %v1934 = vunpack.c.l.b16 %v1866
        %v1935 = vunpack.c.l.b16 %v1867
        %v1936 = vpack.c.b16 %v1905, %v1904
        %v1937 = vpack.c.b16 %v1907, %v1906
        %v1938 = vpack.c.b16 %v1909, %v1908
        %v1939 = vpack.c.b16 %v1911, %v1910
        %v1940 = vpack.c.b16 %v1913, %v1912
        %v1941 = vpack.c.b16 %v1915, %v1914
        %v1942 = vpack.c.b16 %v1917, %v1916
        %v1943 = vpack.c.b16 %v1919, %v1918
        %v1944 = vpack.c.b16 %v1921, %v1920
        %v1945 = vpack.c.b16 %v1923, %v1922
        %v1946 = vpack.c.b16 %v1925, %v1924
        %v1947 = vpack.c.b16 %v1927, %v1926
        %v1948 = vpack.c.b16 %v1929, %v1928
        %v1949 = vpack.c.b16 %v1931, %v1930
        %v1950 = vpack.c.b16 %v1933, %v1932
        %v1951 = vpack.c.b16 %v1935, %v1934
        %1968 = vmatpush.bf16.msra.mxu0 %v1943
        %1969 = vmatpush.bf16.msra.mxu0 %v1942
        %1970 = vmatpush.bf16.msra.mxu0 %v1941
        %1971 = vmatpush.bf16.msra.mxu0 %v1940
        %1972 = vmatpush.bf16.msra.mxu0 %v1939
        %1973 = vmatpush.bf16.msra.mxu0 %v1938
        %1974 = vmatpush.bf16.msra.mxu0 %v1937
        %1975 = vmatpush.bf16.msra.mxu0 %v1936
        %1976 = vmatmul.bf16.gmra.mxu0 %v1834
        %v1977 = vpop.f32.mrf.mxu0
        %v1978 = vadd.f32 %v1870, %v1977
        %v1979 = vpop.f32.mrf.mxu0
        %v1980 = vadd.f32 %v1870, %v1979
        %1981 = vdwg.mxu0
        %1982 = vmatpush.bf16.msra.mxu0 %v1951
        %1983 = vmatpush.bf16.msra.mxu0 %v1950
        %1984 = vmatpush.bf16.msra.mxu0 %v1949
        %1985 = vmatpush.bf16.msra.mxu0 %v1948
        %1986 = vmatpush.bf16.msra.mxu0 %v1947
        %1987 = vmatpush.bf16.msra.mxu0 %v1946
        %1988 = vmatpush.bf16.msra.mxu0 %v1945
        %1989 = vmatpush.bf16.msra.mxu0 %v1944
        %1990 = vmatmul.bf16.gmra.mxu0 %v1835
        %v1991 = vpop.f32.mrf.mxu0
        %v1992 = vadd.f32 %v1978, %v1991
        %v1993 = vpop.f32.mrf.mxu0
        %v1994 = vadd.f32 %v1980, %v1993
        %1995 = vdwg.mxu0
        %v1996 = vadd.f32 %v1697, %v1992
        %v1997 = vadd.f32 %v1698, %v1994
        %v1998 = vld [vmem:[%s827] sm:$0x1]
        %v1999 = vld [vmem:[%s830] sm:$0x1]
        %2000 = vadd.xlane.f32.xlu0 %v1996
        %v2001 = vpop.xlane.xlu0 %2000
        %2002 = vadd.xlane.f32.xlu0 %v1997
        %v2003 = vpop.xlane.xlu0 %2002
        %v2004 = vmul.f32 %v2001, %v1652
        %v2005 = vmul.f32 %v2003, %v1652
        %v2006 = vsub.f32 %v1996, %v2004
        %v2007 = vsub.f32 %v1997, %v2005
        %v2008 = vmul.f32 %v2006, %v2006
        %v2009 = vmul.f32 %v2007, %v2007
        %2010 = vadd.xlane.f32.xlu0 %v2008
        %v2011 = vpop.xlane.xlu0 %2010
        %2012 = vadd.xlane.f32.xlu0 %v2009
        %v2013 = vpop.xlane.xlu0 %2012
        %v2014 = vmul.f32 %v2011, %v1652
        %v2015 = vmul.f32 %v2013, %v1652
        %v2016 = vadd.f32 %v2014, 1e-05
        %v2017 = vadd.f32 %v2015, 1e-05
        %v2018 = vrsqrt.pop %v2016
        %v2019 = vmul.f32 %v2018, %v2016
        %v2020 = vmul.f32 %v2019, %v2018
        %v2021 = vmul.f32 0.5, %v2020
        %v2022 = vsub.f32 1.5, %v2021
        %v2023 = vmul.f32 %v2018, %v2022
        %vm2024 = vweird.f32 %v2016
        %vm2025 = vweird.f32 %v2018
        %vm2026 = vmor %vm2024, %vm2025
        %v2027 = vsel %vm2026, %v2018, %v2023
        %v2028 = vrsqrt.pop %v2017
        %v2029 = vmul.f32 %v2028, %v2017
        %v2030 = vmul.f32 %v2029, %v2028
        %v2031 = vmul.f32 0.5, %v2030
        %v2032 = vsub.f32 1.5, %v2031
        %v2033 = vmul.f32 %v2028, %v2032
        %vm2034 = vweird.f32 %v2017
        %vm2035 = vweird.f32 %v2028
        %vm2036 = vmor %vm2034, %vm2035
        %v2037 = vsel %vm2036, %v2028, %v2033
        %v2038 = vmul.f32 %v2006, %v2027
        %v2039 = vmul.f32 %v2007, %v2037
        %v2041 = vperm.slane %v1998, 0
        %v2043 = vmul.f32 %v2038, %v2041
        %v2044 = vmul.f32 %v2039, %v2041
        %v2046 = vperm.slane %v1999, 0
        %v2048 = vadd.f32 %v2043, %v2046
        %v2049 = vadd.f32 %v2044, %v2046
        %2050 = vst [vmem:[#allocation14] sm:$0xff] %v2048
        %2051 = vst [vmem:[#allocation14 + $0x8] sm:$0xff] %v2049
        // Predicated region
        $region117: #{tpu_custom_call.1} parent=75 // pred_check
          %p2052 = pneg %p422
        $region118: #{tpu_custom_call.1} parent=75 // pred_check_branch
          %2054 = sbr.rel (%p2052) target = $region120
        $region119: #{tpu_custom_call.1} parent=75 // pred_region
          %s2055 = smul.u32 2, %s32
          %2057 = vsyncadd [#allocation4], 0
          %s2058 = smul.addr %s2055, 8
          %s2059 = scalar_lea.hbm %s14, %s2058
          %s2060 = sshll.u32 [#allocation14], 4
          %s2061 = int_to_ptr.vmem [resolvable:$true] %s2060
          %s2062 = sshll.u32 %s2059, 4
          %s2063 = int_to_ptr.hbm [resolvable:$true] %s2062
          %2068 = dma.vmem_to_hbm [thread:$0]  %s2061, 256, %s2063, [#allocation4], 128, 128, 8
        $region120: #{tpu_custom_call.1} parent=75 // pred_fallthru
          _
        // Predicated region
        $region121: #{tpu_custom_call.1} parent=75 // pred_check
          %p2069 = pneg %p422
        $region122: #{tpu_custom_call.1} parent=75 // pred_check_branch
          %2071 = sbr.rel (%p2069) target = $region124
        $region123: #{tpu_custom_call.1} parent=75 // pred_region
          %2073 = dma.done [#allocation4], 256
        $region124: #{tpu_custom_call.1} parent=75 // pred_fallthru
          _
      $region76: #{tpu_custom_call.1} parent=5 // pred_fallthru
        _
      %p2074 = scmp.le.s32.totalorder 2, %s23
      // Predicated region
      $region125: #{tpu_custom_call.1} parent=5 // pred_check
        %p2075 = pneg %p2074
      $region126: #{tpu_custom_call.1} parent=5 // pred_check_branch
        %2077 = sbr.rel (%p2075) target = $region128
      $region127: #{tpu_custom_call.1} parent=5 // pred_region
        %s2078 = ssub.s32 %s23, 2
      $region128: #{tpu_custom_call.1} parent=5 // pred_fallthru
        _
    $region6: #{tpu_custom_call.1} parent=1 // loop_footer
      %s27 = sadd.s32 1, %s23
    $region7: #{tpu_custom_call.1} parent=1 // loop_footer_branch
      %22 = sbr.rel target = $region3
    $region8: #{tpu_custom_call.1} parent=1 // loop_exit
      _
    %2079 = vsyncpa [#allocation3], 1
    %s2080 = scalar_lea.sflag [#allocation3], 1
    %2081 = vsyncpa %s2080, 1
    %2082 = vsyncpa [#allocation6], 1
    %2083 = vsyncpa [#allocation4], 1
    %s2084 = scalar_lea.sflag [#allocation4], 1
    %2085 = vsyncpa %s2084, 1

</llo_original>
